<compile_context>
chip_gen: v5e
topology: v5e:2x2
jax: 0.10.0
libtpu: 0.0.40
codegen_flags: <defaults>
</compile_context>

<pallas_src>
from functools import partial

import jax
import jax.numpy as jnp
from jax import lax
from jax.experimental import pallas as pl
from jax.experimental.pallas import tpu as pltpu


def _mha_kernel(x_ref, w_ref, b_ref, o_ref,
                q_s, k_s, v_s, m_s, l_s, acc_s, *,
                heads_per_block, head_dim, kv_block, seq_len, approx_recip):
    hb, hd, tk = heads_per_block, head_dim, kv_block
    gi = pl.program_id(1)                       # head-block index
    kv = pl.program_id(2)                       # KV tile index (innermost, "arbitrary")
    n_pad = q_s.shape[1]

    # ---- once per (batch, head block): fused QKV projection + accumulator init ----
    @pl.when(kv == 0)
    def _project_and_init():
        x = x_ref[0]                            # (N_pad, E), native dtype
        # One wide MXU GEMM (3*hb*hd output columns); softmax scale pre-folded into
        # the q columns of w/b by the wrapper.
        qkv = jnp.dot(x, w_ref[gi], preferred_element_type=jnp.float32) + b_ref[gi]
        qkv = qkv.astype(x.dtype)
        # Scatter into head-major scratch; paid once per (b, g), not per KV step.
        # Static loop whose results are committed to refs -> no growing live ranges.
        for h in range(hb):
            q_s[h] = qkv[:, h * hd:(h + 1) * hd]
            k_s[h] = qkv[:, (hb + h) * hd:(hb + h + 1) * hd]
            v_s[h] = qkv[:, (2 * hb + h) * hd:(2 * hb + h + 1) * hd]
        m_s[...] = jnp.full(m_s.shape, -jnp.inf, m_s.dtype)
        l_s[...] = jnp.zeros(l_s.shape, l_s.dtype)
        acc_s[...] = jnp.zeros(acc_s.shape, acc_s.dtype)

    # ---- one KV tile: scores batched over heads + online-softmax update ----
    start = pl.multiple_of(kv * tk, tk)
    ks = k_s[:, pl.ds(start, tk), :]            # (hb, tk, hd)
    vs = v_s[:, pl.ds(start, tk), :]
    # NT scores matmul (contract head_dim); q is already scaled.
    # TODO(synk): inspect the Mosaic bundle for an XLU transpose of k here; if one
    # shows up, store k_s pre-transposed as (hb, hd, N_pad) at projection time.
    s = jnp.einsum('hqd,hkd->hqk', q_s[...], ks,
                   preferred_element_type=jnp.float32)          # (hb, N_pad, tk) f32

    if n_pad != seq_len:                        # trace-time check: mask padded keys
        kidx = kv * tk + lax.broadcasted_iota(jnp.int32, (1, 1, tk), 2)
        s = jnp.where(kidx < seq_len, s, -1e30)

    m_prev = m_s[...]
    m_new = jnp.maximum(m_prev, jnp.max(s, axis=-1, keepdims=True))
    alpha = jnp.exp(m_prev - m_new)
    # exp in bf16 for bf16 models: doubles EUP throughput on v6e/v7x and halves the
    # (N, tk) vreg/VMEM traffic feeding the PV matmul (on v5e it is only a size win,
    # still numerically fine). f32 models keep an f32 exp.
    p_dtype = jnp.bfloat16 if v_s.dtype == jnp.bfloat16 else jnp.float32
    p = jnp.exp((s - m_new).astype(p_dtype))
    l_s[...] = alpha * l_s[...] + jnp.sum(p, axis=-1, keepdims=True, dtype=jnp.float32)
    acc_s[...] = alpha * acc_s[...] + jnp.einsum(
        'hqk,hkd->hqd', p.astype(vs.dtype), vs, preferred_element_type=jnp.float32)
    m_s[...] = m_new

    # ---- last KV tile: normalize and store one lane-dense (N_pad, hb*hd) slab ----
    @pl.when(kv == pl.num_programs(2) - 1)
    def _finalize():
        if approx_recip:
            # EUP slot, essentially free; ~1e-3-level error covered by test tolerance.
            inv_l = pl.reciprocal(l_s[...], approx=True)
        else:
            inv_l = 1.0 / l_s[...]
        out = acc_s[...] * inv_l                # (hb, N_pad, hd) f32
        o_ref[0] = jnp.concatenate([out[h] for h in range(hb)],
                                   axis=-1).astype(o_ref.dtype)


def _round_up(a, m):
    return (a + m - 1) // m * m


def _pick_heads_per_block(num_heads, head_dim, lane=128, max_width=512):
    """Largest divisor of num_heads whose output slab (hb*hd) is lane-aligned and
    <= max_width (bounds per-step scratch; e.g. hb=4..8 at hd=64 fills the 256-wide
    MXU and amortizes per-step grid overhead). Falls back to all heads for toy shapes
    (then the out block equals the full E, which is still a legal BlockSpec)."""
    best = None
    for hb in range(1, num_heads + 1):
        if num_heads % hb:
            continue
        width = hb * head_dim
        if width % lane == 0 and width <= max_width:
            best = hb
    return best if best is not None else num_heads


def _vmem_limit_bytes():
    """~7/8 of physical VMEM, capped at 100 MiB: ~100 MiB on v5e/v6e (128 MiB
    physical), ~56 MiB on v7x (64 MiB per TensorCore)."""
    cap = 64 * 1024 * 1024
    try:
        cap = int(getattr(pltpu.get_tpu_info(), "vmem_capacity_bytes", cap))
    except Exception:
        pass
    return int(min(100 * 1024 * 1024, cap - cap // 8))


def multi_head_attention(x, w, b, num_heads, *, heads_per_block=None, kv_block=None,
                         approx_reciprocal=True):
    """ViT MultiHeadAttention forward (fused QKV linear + per-head softmax attention).

    x: (B, N, E); w: (3E, E) torch nn.Linear weight; b: (3E,) torch nn.Linear bias.
    """
    B, N, E = x.shape
    head_dim = E // num_heads
    scale = head_dim ** (-0.5)

    hb = heads_per_block or _pick_heads_per_block(num_heads, head_dim)
    assert num_heads % hb == 0
    G = num_heads // hb                         # number of head blocks
    bw = 3 * hb * head_dim                      # fused QKV width per head block

    # Flash/KV tiling: never materialize the full (N, N) score tile.
    if kv_block is None:
        kv_block = min(512, _round_up(N, 8))
    tk = _round_up(kv_block, 8)
    n_pad = _round_up(N, tk)                    # sublane aligned, multiple of KV tile
    kt = n_pad // tk

    # PyTorch layout: qkv output channel c -> head h = c // (3*hd), j = (c%(3*hd))//hd
    # picks q/k/v. Re-order columns per head block to [q_h0..q_h(hb-1) | k_... | v_...]
    # and fold the softmax scale into the q columns (touch weights once, not scores).
    w_t = jnp.transpose(w).reshape(E, num_heads, 3, head_dim)
    b_r = b.reshape(num_heads, 3, head_dim)
    w_t = w_t.at[:, :, 0, :].multiply(scale)
    b_r = b_r.at[:, 0, :].multiply(scale)
    w_qkv = jnp.transpose(w_t.reshape(E, G, hb, 3, head_dim),
                          (1, 0, 3, 2, 4)).reshape(G, E, bw).astype(x.dtype)
    b_qkv = jnp.transpose(b_r.reshape(G, hb, 3, head_dim),
                          (0, 2, 1, 3)).reshape(G, 1, bw).astype(x.dtype)

    x_p = x if n_pad == N else jnp.pad(x, ((0, 0), (0, n_pad - N), (0, 0)))

    itemsize = jnp.dtype(x.dtype).itemsize
    cost = pl.CostEstimate(
        flops=2 * B * n_pad * E * 3 * E + 4 * B * num_heads * n_pad * n_pad * head_dim,
        transcendentals=B * num_heads * n_pad * n_pad,
        bytes_accessed=(x_p.size + w_qkv.size + b_qkv.size + B * n_pad * E) * itemsize,
    )

    kernel = partial(_mha_kernel, heads_per_block=hb, head_dim=head_dim, kv_block=tk,
                     seq_len=N, approx_recip=approx_reciprocal)

    out = pl.pallas_call(
        kernel,
        out_shape=jax.ShapeDtypeStruct((B, n_pad, E), x.dtype),
        grid_spec=pltpu.PrefetchScalarGridSpec(
            num_scalar_prefetch=0,
            # Batch / head-block axes are parallel (split across v7x's 2 TensorCores
            # when B*G is even); KV is the innermost "arbitrary" reduction axis.
            grid=(B, G, kt),
            in_specs=[
                pl.BlockSpec((1, n_pad, E), lambda bi, gi, kv: (bi, 0, 0)),
                # Whole QKV weight / bias with a constant index_map -> DMA'd once and
                # VMEM-resident for the entire kernel; Buffered(1) avoids reserving a
                # useless second buffer for a block that never changes.
                pl.BlockSpec((G, E, bw), lambda bi, gi, kv: (0, 0, 0),
                             pipeline_mode=pl.Buffered(1)),
                pl.BlockSpec((G, 1, bw), lambda bi, gi, kv: (0, 0, 0),
                             pipeline_mode=pl.Buffered(1)),
                # TODO(synk): on v5e, if the resident weight still misses the VMEM
                # budget, switch the weight spec to per-head-block slices
                # ((1, E, bw), index (gi, 0, 0)) and reorder the grid to (G, B, kt).
            ],
            # Lane-dense output slab per head block, written once on the last KV step.
            out_specs=pl.BlockSpec((1, n_pad, hb * head_dim),
                                   lambda bi, gi, kv: (bi, 0, gi)),
            scratch_shapes=[
                pltpu.VMEM((hb, n_pad, head_dim), x.dtype),      # q (pre-scaled)
                pltpu.VMEM((hb, n_pad, head_dim), x.dtype),      # k
                pltpu.VMEM((hb, n_pad, head_dim), x.dtype),      # v
                pltpu.VMEM((hb, n_pad, 1), jnp.float32),         # running max m
                pltpu.VMEM((hb, n_pad, 1), jnp.float32),         # running sum l
                pltpu.VMEM((hb, n_pad, head_dim), jnp.float32),  # f32 accumulator
            ],
        ),
        compiler_params=pltpu.CompilerParams(
            dimension_semantics=("parallel", "parallel", "arbitrary"),
            vmem_limit_bytes=_vmem_limit_bytes(),
        ),
        cost_estimate=cost,
    )(x_p, w_qkv, b_qkv)

    return out if n_pad == N else out[:, :N, :]


def _reference_mha(x, w, b, num_heads):
    x, w, b = (jnp.asarray(a, jnp.float32) for a in (x, w, b))
    B, N, E = x.shape
    hd = E // num_heads
    scale = hd ** (-0.5)
    qkv = (x @ w.T + b).reshape(B, N, num_heads, 3 * hd)
    qkv = jnp.transpose(qkv, (0, 2, 1, 3))
    q, k, v = jnp.split(qkv, 3, axis=-1)
    atten = jax.nn.softmax(jnp.einsum("bhqd,bhkd->bhqk", q, k) * scale, axis=-1)
    out = jnp.einsum("bhqk,bhkd->bhqd", atten, v)
    return jnp.transpose(out, (0, 2, 1, 3)).reshape(B, N, E)


if __name__ == "__main__":
    key = jax.random.PRNGKey(0)

    def run_case(idx, B, N, E, H, dtype, atol, rtol, **kwargs):
        kx, kw, kb = jax.random.split(jax.random.fold_in(key, idx), 3)
        x = jax.random.normal(kx, (B, N, E), dtype=jnp.float32).astype(dtype)
        w = (jax.random.normal(kw, (3 * E, E), dtype=jnp.float32) * 0.05).astype(dtype)
        b = (jax.random.normal(kb, (3 * E,), dtype=jnp.float32) * 0.05).astype(dtype)
        out = jax.block_until_ready(multi_head_attention(x, w, b, H, **kwargs))
        ref = _reference_mha(x, w, b, H)
        assert out.shape == (B, N, E)
        err = jnp.max(jnp.abs(out.astype(jnp.float32) - ref))
        assert jnp.allclose(out.astype(jnp.float32), ref, atol=atol, rtol=rtol), (
            f"case {idx}: mismatch vs reference (max abs err {err:.3e})")

    # 1) tiny aligned f32 shapes (head_dim < lane -> full-E fallback head block).
    run_case(1, B=2, N=8, E=32, H=8, dtype=jnp.float32, atol=1e-2, rtol=1e-2)
    # 2) ViT-like f32: unaligned N=197 (padding + key mask), 2 head blocks, 4 KV tiles
    #    (exercises the flash/online-softmax reduction axis).
    run_case(2, B=2, N=197, E=512, H=8, dtype=jnp.float32, atol=1e-2, rtol=1e-2,
             heads_per_block=4, kv_block=64)
    # 3) bf16 production dtype (bf16 QK^T / exp / PV path), loose tolerance for bf16.
    run_case(3, B=2, N=16, E=128, H=2, dtype=jnp.bfloat16, atol=5e-2, rtol=5e-2)

    print("KERNEL_OK")
</pallas_src>

<mosaic_0001>
module attributes {stable_mosaic.version = 11 : i64} {
  func.func @_mha_kernel(%arg0: i32, %arg1: i32, %arg2: i32, %arg3: memref<1x8x32xf32, #tpu.memory_space<vmem>>, %arg4: memref<1x32x96xf32, #tpu.memory_space<vmem>>, %arg5: memref<1x1x96xf32, #tpu.memory_space<vmem>>, %arg6: memref<1x8x32xf32, #tpu.memory_space<vmem>>, %arg7: memref<8x8x4xf32, #tpu.memory_space<vmem>>, %arg8: memref<8x8x4xf32, #tpu.memory_space<vmem>>, %arg9: memref<8x8x4xf32, #tpu.memory_space<vmem>>, %arg10: memref<8x8x1xf32, #tpu.memory_space<vmem>>, %arg11: memref<8x8x1xf32, #tpu.memory_space<vmem>>, %arg12: memref<8x8x4xf32, #tpu.memory_space<vmem>>) attributes {dimension_semantics = [#tpu.dimension_semantics<parallel>, #tpu.dimension_semantics<parallel>, #tpu.dimension_semantics<arbitrary>], iteration_bounds = array<i64: 2, 1, 1>, scalar_prefetch = 0 : i64, scratch_operands = 6 : i64, tpu.core_type = #tpu.core_type<tc>, window_params = [{transform_indices = @transform_0, window_bounds = array<i64: 1, 8, 32>}, {pipeline_mode = #tpu.pipeline_mode<synchronous>, transform_indices = @transform_1, window_bounds = array<i64: 1, 32, 96>}, {pipeline_mode = #tpu.pipeline_mode<synchronous>, transform_indices = @transform_2, window_bounds = array<i64: 1, 1, 96>}, {transform_indices = @transform_3, window_bounds = array<i64: 1, 8, 32>}]} {
    %c0_i32 = arith.constant 0 : i32
    %0 = arith.cmpi eq, %arg2, %c0_i32 : i32
    %1 = arith.extui %0 : i1 to i32
    %c0_i32_0 = arith.constant 0 : i32
    %2 = arith.cmpi ne, %1, %c0_i32_0 : i32
    scf.if %2 {
      %c0_30 = arith.constant 0 : index
      %c0_31 = arith.constant 0 : index
      %c0_32 = arith.constant 0 : index
      %36 = vector.load %arg3[%c0_30, %c0_31, %c0_32] : memref<1x8x32xf32, #tpu.memory_space<vmem>>, vector<1x8x32xf32>
      %37 = vector.shape_cast %36 : vector<1x8x32xf32> to vector<8x32xf32>
      %38 = arith.index_cast %arg1 : i32 to index
      %c0_33 = arith.constant 0 : index
      %c0_34 = arith.constant 0 : index
      %39 = vector.load %arg4[%38, %c0_33, %c0_34] : memref<1x32x96xf32, #tpu.memory_space<vmem>>, vector<1x32x96xf32>
      %40 = vector.shape_cast %39 : vector<1x32x96xf32> to vector<32x96xf32>
      %cst_35 = arith.constant dense<0.000000e+00> : vector<8x96xf32>
      %41 = tpu.matmul %37, %40, %cst_35 {dimension_numbers = #tpu.dot_dimension_numbers<[1], [0], [0], [1], [0, 0, 1, 1], [], []>} : vector<8x32xf32>, vector<32x96xf32>, vector<8x96xf32> -> vector<8x96xf32>
      %42 = arith.index_cast %arg1 : i32 to index
      %c0_36 = arith.constant 0 : index
      %c0_37 = arith.constant 0 : index
      %43 = vector.load %arg5[%42, %c0_36, %c0_37] : memref<1x1x96xf32, #tpu.memory_space<vmem>>, vector<1x1x96xf32>
      %44 = vector.shape_cast %43 : vector<1x1x96xf32> to vector<1x96xf32>
      %45 = vector.broadcast %44 : vector<1x96xf32> to vector<8x96xf32>
      %46 = arith.addf %41, %45 : vector<8x96xf32>
      %47 = vector.extract_strided_slice %46 {offsets = [0, 0], sizes = [8, 4], strides = [1, 1]} : vector<8x96xf32> to vector<8x4xf32>
      %c0_38 = arith.constant 0 : index
      %c0_39 = arith.constant 0 : index
      %c0_40 = arith.constant 0 : index
      %48 = vector.load %arg7[%c0_38, %c0_39, %c0_40] : memref<8x8x4xf32, #tpu.memory_space<vmem>>, vector<1x8x4xf32>
      %49 = vector.shape_cast %48 : vector<1x8x4xf32> to vector<8x4xf32>
      %50 = vector.shape_cast %47 : vector<8x4xf32> to vector<1x8x4xf32>
      tpu.vector_store %arg7[%c0_38, %c0_39, %c0_40], %50 {strides = array<i32>} : memref<8x8x4xf32, #tpu.memory_space<vmem>>, vector<1x8x4xf32>,
      %51 = vector.extract_strided_slice %46 {offsets = [0, 32], sizes = [8, 4], strides = [1, 1]} : vector<8x96xf32> to vector<8x4xf32>
      %c0_41 = arith.constant 0 : index
      %c0_42 = arith.constant 0 : index
      %c0_43 = arith.constant 0 : index
      %52 = vector.load %arg8[%c0_41, %c0_42, %c0_43] : memref<8x8x4xf32, #tpu.memory_space<vmem>>, vector<1x8x4xf32>
      %53 = vector.shape_cast %52 : vector<1x8x4xf32> to vector<8x4xf32>
      %54 = vector.shape_cast %51 : vector<8x4xf32> to vector<1x8x4xf32>
      tpu.vector_store %arg8[%c0_41, %c0_42, %c0_43], %54 {strides = array<i32>} : memref<8x8x4xf32, #tpu.memory_space<vmem>>, vector<1x8x4xf32>,
      %55 = vector.extract_strided_slice %46 {offsets = [0, 64], sizes = [8, 4], strides = [1, 1]} : vector<8x96xf32> to vector<8x4xf32>
      %c0_44 = arith.constant 0 : index
      %c0_45 = arith.constant 0 : index
      %c0_46 = arith.constant 0 : index
      %56 = vector.load %arg9[%c0_44, %c0_45, %c0_46] : memref<8x8x4xf32, #tpu.memory_space<vmem>>, vector<1x8x4xf32>
      %57 = vector.shape_cast %56 : vector<1x8x4xf32> to vector<8x4xf32>
      %58 = vector.shape_cast %55 : vector<8x4xf32> to vector<1x8x4xf32>
      tpu.vector_store %arg9[%c0_44, %c0_45, %c0_46], %58 {strides = array<i32>} : memref<8x8x4xf32, #tpu.memory_space<vmem>>, vector<1x8x4xf32>,
      %59 = vector.extract_strided_slice %46 {offsets = [0, 4], sizes = [8, 4], strides = [1, 1]} : vector<8x96xf32> to vector<8x4xf32>
      %c1 = arith.constant 1 : index
      %c0_47 = arith.constant 0 : index
      %c0_48 = arith.constant 0 : index
      %60 = vector.load %arg7[%c1, %c0_47, %c0_48] : memref<8x8x4xf32, #tpu.memory_space<vmem>>, vector<1x8x4xf32>
      %61 = vector.shape_cast %60 : vector<1x8x4xf32> to vector<8x4xf32>
      %62 = vector.shape_cast %59 : vector<8x4xf32> to vector<1x8x4xf32>
      tpu.vector_store %arg7[%c1, %c0_47, %c0_48], %62 {strides = array<i32>} : memref<8x8x4xf32, #tpu.memory_space<vmem>>, vector<1x8x4xf32>,
      %63 = vector.extract_strided_slice %46 {offsets = [0, 36], sizes = [8, 4], strides = [1, 1]} : vector<8x96xf32> to vector<8x4xf32>
      %c1_49 = arith.constant 1 : index
      %c0_50 = arith.constant 0 : index
      %c0_51 = arith.constant 0 : index
      %64 = vector.load %arg8[%c1_49, %c0_50, %c0_51] : memref<8x8x4xf32, #tpu.memory_space<vmem>>, vector<1x8x4xf32>
      %65 = vector.shape_cast %64 : vector<1x8x4xf32> to vector<8x4xf32>
      %66 = vector.shape_cast %63 : vector<8x4xf32> to vector<1x8x4xf32>
      tpu.vector_store %arg8[%c1_49, %c0_50, %c0_51], %66 {strides = array<i32>} : memref<8x8x4xf32, #tpu.memory_space<vmem>>, vector<1x8x4xf32>,
      %67 = vector.extract_strided_slice %46 {offsets = [0, 68], sizes = [8, 4], strides = [1, 1]} : vector<8x96xf32> to vector<8x4xf32>
      %c1_52 = arith.constant 1 : index
      %c0_53 = arith.constant 0 : index
      %c0_54 = arith.constant 0 : index
      %68 = vector.load %arg9[%c1_52, %c0_53, %c0_54] : memref<8x8x4xf32, #tpu.memory_space<vmem>>, vector<1x8x4xf32>
      %69 = vector.shape_cast %68 : vector<1x8x4xf32> to vector<8x4xf32>
      %70 = vector.shape_cast %67 : vector<8x4xf32> to vector<1x8x4xf32>
      tpu.vector_store %arg9[%c1_52, %c0_53, %c0_54], %70 {strides = array<i32>} : memref<8x8x4xf32, #tpu.memory_space<vmem>>, vector<1x8x4xf32>,
      %71 = vector.extract_strided_slice %46 {offsets = [0, 8], sizes = [8, 4], strides = [1, 1]} : vector<8x96xf32> to vector<8x4xf32>
      %c2 = arith.constant 2 : index
      %c0_55 = arith.constant 0 : index
      %c0_56 = arith.constant 0 : index
      %72 = vector.load %arg7[%c2, %c0_55, %c0_56] : memref<8x8x4xf32, #tpu.memory_space<vmem>>, vector<1x8x4xf32>
      %73 = vector.shape_cast %72 : vector<1x8x4xf32> to vector<8x4xf32>
      %74 = vector.shape_cast %71 : vector<8x4xf32> to vector<1x8x4xf32>
      tpu.vector_store %arg7[%c2, %c0_55, %c0_56], %74 {strides = array<i32>} : memref<8x8x4xf32, #tpu.memory_space<vmem>>, vector<1x8x4xf32>,
      %75 = vector.extract_strided_slice %46 {offsets = [0, 40], sizes = [8, 4], strides = [1, 1]} : vector<8x96xf32> to vector<8x4xf32>
      %c2_57 = arith.constant 2 : index
      %c0_58 = arith.constant 0 : index
      %c0_59 = arith.constant 0 : index
      %76 = vector.load %arg8[%c2_57, %c0_58, %c0_59] : memref<8x8x4xf32, #tpu.memory_space<vmem>>, vector<1x8x4xf32>
      %77 = vector.shape_cast %76 : vector<1x8x4xf32> to vector<8x4xf32>
      %78 = vector.shape_cast %75 : vector<8x4xf32> to vector<1x8x4xf32>
      tpu.vector_store %arg8[%c2_57, %c0_58, %c0_59], %78 {strides = array<i32>} : memref<8x8x4xf32, #tpu.memory_space<vmem>>, vector<1x8x4xf32>,
      %79 = vector.extract_strided_slice %46 {offsets = [0, 72], sizes = [8, 4], strides = [1, 1]} : vector<8x96xf32> to vector<8x4xf32>
      %c2_60 = arith.constant 2 : index
      %c0_61 = arith.constant 0 : index
      %c0_62 = arith.constant 0 : index
      %80 = vector.load %arg9[%c2_60, %c0_61, %c0_62] : memref<8x8x4xf32, #tpu.memory_space<vmem>>, vector<1x8x4xf32>
      %81 = vector.shape_cast %80 : vector<1x8x4xf32> to vector<8x4xf32>
      %82 = vector.shape_cast %79 : vector<8x4xf32> to vector<1x8x4xf32>
      tpu.vector_store %arg9[%c2_60, %c0_61, %c0_62], %82 {strides = array<i32>} : memref<8x8x4xf32, #tpu.memory_space<vmem>>, vector<1x8x4xf32>,
      %83 = vector.extract_strided_slice %46 {offsets = [0, 12], sizes = [8, 4], strides = [1, 1]} : vector<8x96xf32> to vector<8x4xf32>
      %c3 = arith.constant 3 : index
      %c0_63 = arith.constant 0 : index
      %c0_64 = arith.constant 0 : index
      %84 = vector.load %arg7[%c3, %c0_63, %c0_64] : memref<8x8x4xf32, #tpu.memory_space<vmem>>, vector<1x8x4xf32>
      %85 = vector.shape_cast %84 : vector<1x8x4xf32> to vector<8x4xf32>
      %86 = vector.shape_cast %83 : vector<8x4xf32> to vector<1x8x4xf32>
      tpu.vector_store %arg7[%c3, %c0_63, %c0_64], %86 {strides = array<i32>} : memref<8x8x4xf32, #tpu.memory_space<vmem>>, vector<1x8x4xf32>,
      %87 = vector.extract_strided_slice %46 {offsets = [0, 44], sizes = [8, 4], strides = [1, 1]} : vector<8x96xf32> to vector<8x4xf32>
      %c3_65 = arith.constant 3 : index
      %c0_66 = arith.constant 0 : index
      %c0_67 = arith.constant 0 : index
      %88 = vector.load %arg8[%c3_65, %c0_66, %c0_67] : memref<8x8x4xf32, #tpu.memory_space<vmem>>, vector<1x8x4xf32>
      %89 = vector.shape_cast %88 : vector<1x8x4xf32> to vector<8x4xf32>
      %90 = vector.shape_cast %87 : vector<8x4xf32> to vector<1x8x4xf32>
      tpu.vector_store %arg8[%c3_65, %c0_66, %c0_67], %90 {strides = array<i32>} : memref<8x8x4xf32, #tpu.memory_space<vmem>>, vector<1x8x4xf32>,
      %91 = vector.extract_strided_slice %46 {offsets = [0, 76], sizes = [8, 4], strides = [1, 1]} : vector<8x96xf32> to vector<8x4xf32>
      %c3_68 = arith.constant 3 : index
      %c0_69 = arith.constant 0 : index
      %c0_70 = arith.constant 0 : index
      %92 = vector.load %arg9[%c3_68, %c0_69, %c0_70] : memref<8x8x4xf32, #tpu.memory_space<vmem>>, vector<1x8x4xf32>
      %93 = vector.shape_cast %92 : vector<1x8x4xf32> to vector<8x4xf32>
      %94 = vector.shape_cast %91 : vector<8x4xf32> to vector<1x8x4xf32>
      tpu.vector_store %arg9[%c3_68, %c0_69, %c0_70], %94 {strides = array<i32>} : memref<8x8x4xf32, #tpu.memory_space<vmem>>, vector<1x8x4xf32>,
      %95 = vector.extract_strided_slice %46 {offsets = [0, 16], sizes = [8, 4], strides = [1, 1]} : vector<8x96xf32> to vector<8x4xf32>
      %c4 = arith.constant 4 : index
      %c0_71 = arith.constant 0 : index
      %c0_72 = arith.constant 0 : index
      %96 = vector.load %arg7[%c4, %c0_71, %c0_72] : memref<8x8x4xf32, #tpu.memory_space<vmem>>, vector<1x8x4xf32>
      %97 = vector.shape_cast %96 : vector<1x8x4xf32> to vector<8x4xf32>
      %98 = vector.shape_cast %95 : vector<8x4xf32> to vector<1x8x4xf32>
      tpu.vector_store %arg7[%c4, %c0_71, %c0_72], %98 {strides = array<i32>} : memref<8x8x4xf32, #tpu.memory_space<vmem>>, vector<1x8x4xf32>,
      %99 = vector.extract_strided_slice %46 {offsets = [0, 48], sizes = [8, 4], strides = [1, 1]} : vector<8x96xf32> to vector<8x4xf32>
      %c4_73 = arith.constant 4 : index
      %c0_74 = arith.constant 0 : index
      %c0_75 = arith.constant 0 : index
      %100 = vector.load %arg8[%c4_73, %c0_74, %c0_75] : memref<8x8x4xf32, #tpu.memory_space<vmem>>, vector<1x8x4xf32>
      %101 = vector.shape_cast %100 : vector<1x8x4xf32> to vector<8x4xf32>
      %102 = vector.shape_cast %99 : vector<8x4xf32> to vector<1x8x4xf32>
      tpu.vector_store %arg8[%c4_73, %c0_74, %c0_75], %102 {strides = array<i32>} : memref<8x8x4xf32, #tpu.memory_space<vmem>>, vector<1x8x4xf32>,
      %103 = vector.extract_strided_slice %46 {offsets = [0, 80], sizes = [8, 4], strides = [1, 1]} : vector<8x96xf32> to vector<8x4xf32>
      %c4_76 = arith.constant 4 : index
      %c0_77 = arith.constant 0 : index
      %c0_78 = arith.constant 0 : index
      %104 = vector.load %arg9[%c4_76, %c0_77, %c0_78] : memref<8x8x4xf32, #tpu.memory_space<vmem>>, vector<1x8x4xf32>
      %105 = vector.shape_cast %104 : vector<1x8x4xf32> to vector<8x4xf32>
      %106 = vector.shape_cast %103 : vector<8x4xf32> to vector<1x8x4xf32>
      tpu.vector_store %arg9[%c4_76, %c0_77, %c0_78], %106 {strides = array<i32>} : memref<8x8x4xf32, #tpu.memory_space<vmem>>, vector<1x8x4xf32>,
      %107 = vector.extract_strided_slice %46 {offsets = [0, 20], sizes = [8, 4], strides = [1, 1]} : vector<8x96xf32> to vector<8x4xf32>
      %c5 = arith.constant 5 : index
      %c0_79 = arith.constant 0 : index
      %c0_80 = arith.constant 0 : index
      %108 = vector.load %arg7[%c5, %c0_79, %c0_80] : memref<8x8x4xf32, #tpu.memory_space<vmem>>, vector<1x8x4xf32>
      %109 = vector.shape_cast %108 : vector<1x8x4xf32> to vector<8x4xf32>
      %110 = vector.shape_cast %107 : vector<8x4xf32> to vector<1x8x4xf32>
      tpu.vector_store %arg7[%c5, %c0_79, %c0_80], %110 {strides = array<i32>} : memref<8x8x4xf32, #tpu.memory_space<vmem>>, vector<1x8x4xf32>,
      %111 = vector.extract_strided_slice %46 {offsets = [0, 52], sizes = [8, 4], strides = [1, 1]} : vector<8x96xf32> to vector<8x4xf32>
      %c5_81 = arith.constant 5 : index
      %c0_82 = arith.constant 0 : index
      %c0_83 = arith.constant 0 : index
      %112 = vector.load %arg8[%c5_81, %c0_82, %c0_83] : memref<8x8x4xf32, #tpu.memory_space<vmem>>, vector<1x8x4xf32>
      %113 = vector.shape_cast %112 : vector<1x8x4xf32> to vector<8x4xf32>
      %114 = vector.shape_cast %111 : vector<8x4xf32> to vector<1x8x4xf32>
      tpu.vector_store %arg8[%c5_81, %c0_82, %c0_83], %114 {strides = array<i32>} : memref<8x8x4xf32, #tpu.memory_space<vmem>>, vector<1x8x4xf32>,
      %115 = vector.extract_strided_slice %46 {offsets = [0, 84], sizes = [8, 4], strides = [1, 1]} : vector<8x96xf32> to vector<8x4xf32>
      %c5_84 = arith.constant 5 : index
      %c0_85 = arith.constant 0 : index
      %c0_86 = arith.constant 0 : index
      %116 = vector.load %arg9[%c5_84, %c0_85, %c0_86] : memref<8x8x4xf32, #tpu.memory_space<vmem>>, vector<1x8x4xf32>
      %117 = vector.shape_cast %116 : vector<1x8x4xf32> to vector<8x4xf32>
      %118 = vector.shape_cast %115 : vector<8x4xf32> to vector<1x8x4xf32>
      tpu.vector_store %arg9[%c5_84, %c0_85, %c0_86], %118 {strides = array<i32>} : memref<8x8x4xf32, #tpu.memory_space<vmem>>, vector<1x8x4xf32>,
      %119 = vector.extract_strided_slice %46 {offsets = [0, 24], sizes = [8, 4], strides = [1, 1]} : vector<8x96xf32> to vector<8x4xf32>
      %c6 = arith.constant 6 : index
      %c0_87 = arith.constant 0 : index
      %c0_88 = arith.constant 0 : index
      %120 = vector.load %arg7[%c6, %c0_87, %c0_88] : memref<8x8x4xf32, #tpu.memory_space<vmem>>, vector<1x8x4xf32>
      %121 = vector.shape_cast %120 : vector<1x8x4xf32> to vector<8x4xf32>
      %122 = vector.shape_cast %119 : vector<8x4xf32> to vector<1x8x4xf32>
      tpu.vector_store %arg7[%c6, %c0_87, %c0_88], %122 {strides = array<i32>} : memref<8x8x4xf32, #tpu.memory_space<vmem>>, vector<1x8x4xf32>,
      %123 = vector.extract_strided_slice %46 {offsets = [0, 56], sizes = [8, 4], strides = [1, 1]} : vector<8x96xf32> to vector<8x4xf32>
      %c6_89 = arith.constant 6 : index
      %c0_90 = arith.constant 0 : index
      %c0_91 = arith.constant 0 : index
      %124 = vector.load %arg8[%c6_89, %c0_90, %c0_91] : memref<8x8x4xf32, #tpu.memory_space<vmem>>, vector<1x8x4xf32>
      %125 = vector.shape_cast %124 : vector<1x8x4xf32> to vector<8x4xf32>
      %126 = vector.shape_cast %123 : vector<8x4xf32> to vector<1x8x4xf32>
      tpu.vector_store %arg8[%c6_89, %c0_90, %c0_91], %126 {strides = array<i32>} : memref<8x8x4xf32, #tpu.memory_space<vmem>>, vector<1x8x4xf32>,
      %127 = vector.extract_strided_slice %46 {offsets = [0, 88], sizes = [8, 4], strides = [1, 1]} : vector<8x96xf32> to vector<8x4xf32>
      %c6_92 = arith.constant 6 : index
      %c0_93 = arith.constant 0 : index
      %c0_94 = arith.constant 0 : index
      %128 = vector.load %arg9[%c6_92, %c0_93, %c0_94] : memref<8x8x4xf32, #tpu.memory_space<vmem>>, vector<1x8x4xf32>
      %129 = vector.shape_cast %128 : vector<1x8x4xf32> to vector<8x4xf32>
      %130 = vector.shape_cast %127 : vector<8x4xf32> to vector<1x8x4xf32>
      tpu.vector_store %arg9[%c6_92, %c0_93, %c0_94], %130 {strides = array<i32>} : memref<8x8x4xf32, #tpu.memory_space<vmem>>, vector<1x8x4xf32>,
      %131 = vector.extract_strided_slice %46 {offsets = [0, 28], sizes = [8, 4], strides = [1, 1]} : vector<8x96xf32> to vector<8x4xf32>
      %c7 = arith.constant 7 : index
      %c0_95 = arith.constant 0 : index
      %c0_96 = arith.constant 0 : index
      %132 = vector.load %arg7[%c7, %c0_95, %c0_96] : memref<8x8x4xf32, #tpu.memory_space<vmem>>, vector<1x8x4xf32>
      %133 = vector.shape_cast %132 : vector<1x8x4xf32> to vector<8x4xf32>
      %134 = vector.shape_cast %131 : vector<8x4xf32> to vector<1x8x4xf32>
      tpu.vector_store %arg7[%c7, %c0_95, %c0_96], %134 {strides = array<i32>} : memref<8x8x4xf32, #tpu.memory_space<vmem>>, vector<1x8x4xf32>,
      %135 = vector.extract_strided_slice %46 {offsets = [0, 60], sizes = [8, 4], strides = [1, 1]} : vector<8x96xf32> to vector<8x4xf32>
      %c7_97 = arith.constant 7 : index
      %c0_98 = arith.constant 0 : index
      %c0_99 = arith.constant 0 : index
      %136 = vector.load %arg8[%c7_97, %c0_98, %c0_99] : memref<8x8x4xf32, #tpu.memory_space<vmem>>, vector<1x8x4xf32>
      %137 = vector.shape_cast %136 : vector<1x8x4xf32> to vector<8x4xf32>
      %138 = vector.shape_cast %135 : vector<8x4xf32> to vector<1x8x4xf32>
      tpu.vector_store %arg8[%c7_97, %c0_98, %c0_99], %138 {strides = array<i32>} : memref<8x8x4xf32, #tpu.memory_space<vmem>>, vector<1x8x4xf32>,
      %139 = vector.extract_strided_slice %46 {offsets = [0, 92], sizes = [8, 4], strides = [1, 1]} : vector<8x96xf32> to vector<8x4xf32>
      %c7_100 = arith.constant 7 : index
      %c0_101 = arith.constant 0 : index
      %c0_102 = arith.constant 0 : index
      %140 = vector.load %arg9[%c7_100, %c0_101, %c0_102] : memref<8x8x4xf32, #tpu.memory_space<vmem>>, vector<1x8x4xf32>
      %141 = vector.shape_cast %140 : vector<1x8x4xf32> to vector<8x4xf32>
      %142 = vector.shape_cast %139 : vector<8x4xf32> to vector<1x8x4xf32>
      tpu.vector_store %arg9[%c7_100, %c0_101, %c0_102], %142 {strides = array<i32>} : memref<8x8x4xf32, #tpu.memory_space<vmem>>, vector<1x8x4xf32>,
      %cst_103 = arith.constant 0xFF800000 : f32
      %143 = vector.broadcast %cst_103 : f32 to vector<8x8x1xf32>
      %c0_104 = arith.constant 0 : index
      %c0_105 = arith.constant 0 : index
      %c0_106 = arith.constant 0 : index
      %144 = vector.load %arg10[%c0_104, %c0_105, %c0_106] : memref<8x8x1xf32, #tpu.memory_space<vmem>>, vector<8x8x1xf32>
      tpu.vector_store %arg10[%c0_104, %c0_105, %c0_106], %143 {strides = array<i32>} : memref<8x8x1xf32, #tpu.memory_space<vmem>>, vector<8x8x1xf32>,
      %cst_107 = arith.constant 0.000000e+00 : f32
      %145 = vector.broadcast %cst_107 : f32 to vector<8x8x1xf32>
      %c0_108 = arith.constant 0 : index
      %c0_109 = arith.constant 0 : index
      %c0_110 = arith.constant 0 : index
      %146 = vector.load %arg11[%c0_108, %c0_109, %c0_110] : memref<8x8x1xf32, #tpu.memory_space<vmem>>, vector<8x8x1xf32>
      tpu.vector_store %arg11[%c0_108, %c0_109, %c0_110], %145 {strides = array<i32>} : memref<8x8x1xf32, #tpu.memory_space<vmem>>, vector<8x8x1xf32>,
      %cst_111 = arith.constant 0.000000e+00 : f32
      %147 = vector.broadcast %cst_111 : f32 to vector<8x8x4xf32>
      %c0_112 = arith.constant 0 : index
      %c0_113 = arith.constant 0 : index
      %c0_114 = arith.constant 0 : index
      %148 = vector.load %arg12[%c0_112, %c0_113, %c0_114] : memref<8x8x4xf32, #tpu.memory_space<vmem>>, vector<8x8x4xf32>
      tpu.vector_store %arg12[%c0_112, %c0_113, %c0_114], %147 {strides = array<i32>} : memref<8x8x4xf32, #tpu.memory_space<vmem>>, vector<8x8x4xf32>,
    } else {
    }
    %c8_i32 = arith.constant 8 : i32
    %3 = arith.muli %arg2, %c8_i32 : i32
    %4 = tpu.assume_multiple %3, 8 : i32
    %c0 = arith.constant 0 : index
    %5 = arith.index_cast %4 : i32 to index
    %c0_1 = arith.constant 0 : index
    %6 = vector.load %arg8[%c0, %5, %c0_1] : memref<8x8x4xf32, #tpu.memory_space<vmem>>, vector<8x8x4xf32>
    %c0_2 = arith.constant 0 : index
    %7 = arith.index_cast %4 : i32 to index
    %c0_3 = arith.constant 0 : index
    %8 = vector.load %arg9[%c0_2, %7, %c0_3] : memref<8x8x4xf32, #tpu.memory_space<vmem>>, vector<8x8x4xf32>
    %c0_4 = arith.constant 0 : index
    %c0_5 = arith.constant 0 : index
    %c0_6 = arith.constant 0 : index
    %9 = vector.load %arg7[%c0_4, %c0_5, %c0_6] : memref<8x8x4xf32, #tpu.memory_space<vmem>>, vector<8x8x4xf32>
    "tpu.trace_start"() <{level = 10 : i32, message = "hqd,hkd->hqk"}> : () -> ()
    %cst = arith.constant dense<0.000000e+00> : vector<8x8x8xf32>
    %10 = tpu.matmul %9, %6, %cst {dimension_numbers = #tpu.dot_dimension_numbers<[2], [2], [1], [1], [0, 0, 0, 1, 1, 1], [0], [0]>} : vector<8x8x4xf32>, vector<8x8x4xf32>, vector<8x8x8xf32> -> vector<8x8x8xf32>
    "tpu.trace_stop"() : () -> ()
    %c0_7 = arith.constant 0 : index
    %c0_8 = arith.constant 0 : index
    %c0_9 = arith.constant 0 : index
    %11 = vector.load %arg10[%c0_7, %c0_8, %c0_9] : memref<8x8x1xf32, #tpu.memory_space<vmem>>, vector<8x8x1xf32>
    %cst_10 = arith.constant dense<0xFF800000> : vector<8x8xf32>
    %12 = vector.multi_reduction <maximumf>, %10, %cst_10 [2] : vector<8x8x8xf32> to vector<8x8xf32>
    %13 = vector.shape_cast %12 : vector<8x8xf32> to vector<8x8x1xf32>
    %14 = arith.maximumf %11, %13 : vector<8x8x1xf32>
    %15 = arith.subf %11, %14 : vector<8x8x1xf32>
    %16 = math.exp %15 : vector<8x8x1xf32>
    %17 = vector.broadcast %14 : vector<8x8x1xf32> to vector<8x8x8xf32>
    %18 = arith.subf %10, %17 : vector<8x8x8xf32>
    %19 = math.exp %18 : vector<8x8x8xf32>
    %c0_11 = arith.constant 0 : index
    %c0_12 = arith.constant 0 : index
    %c0_13 = arith.constant 0 : index
    %20 = vector.load %arg11[%c0_11, %c0_12, %c0_13] : memref<8x8x1xf32, #tpu.memory_space<vmem>>, vector<8x8x1xf32>
    %21 = arith.mulf %16, %20 : vector<8x8x1xf32>
    %cst_14 = arith.constant dense<0.000000e+00> : vector<8x8xf32>
    %22 = vector.multi_reduction <add>, %19, %cst_14 [2] : vector<8x8x8xf32> to vector<8x8xf32>
    %23 = vector.shape_cast %22 : vector<8x8xf32> to vector<8x8x1xf32>
    %24 = arith.addf %21, %23 : vector<8x8x1xf32>
    %c0_15 = arith.constant 0 : index
    %c0_16 = arith.constant 0 : index
    %c0_17 = arith.constant 0 : index
    %25 = vector.load %arg11[%c0_15, %c0_16, %c0_17] : memref<8x8x1xf32, #tpu.memory_space<vmem>>, vector<8x8x1xf32>
    tpu.vector_store %arg11[%c0_15, %c0_16, %c0_17], %24 {strides = array<i32>} : memref<8x8x1xf32, #tpu.memory_space<vmem>>, vector<8x8x1xf32>,
    %c0_18 = arith.constant 0 : index
    %c0_19 = arith.constant 0 : index
    %c0_20 = arith.constant 0 : index
    %26 = vector.load %arg12[%c0_18, %c0_19, %c0_20] : memref<8x8x4xf32, #tpu.memory_space<vmem>>, vector<8x8x4xf32>
    %27 = vector.broadcast %16 : vector<8x8x1xf32> to vector<8x8x4xf32>
    %28 = arith.mulf %27, %26 : vector<8x8x4xf32>
    "tpu.trace_start"() <{level = 10 : i32, message = "hqk,hkd->hqd"}> : () -> ()
    %cst_21 = arith.constant dense<0.000000e+00> : vector<8x8x4xf32>
    %29 = tpu.matmul %19, %8, %cst_21 {dimension_numbers = #tpu.dot_dimension_numbers<[2], [1], [1], [2], [0, 0, 0, 1, 1, 2], [0], [0]>} : vector<8x8x8xf32>, vector<8x8x4xf32>, vector<8x8x4xf32> -> vector<8x8x4xf32>
    "tpu.trace_stop"() : () -> ()
    %30 = arith.addf %28, %29 : vector<8x8x4xf32>
    %c0_22 = arith.constant 0 : index
    %c0_23 = arith.constant 0 : index
    %c0_24 = arith.constant 0 : index
    %31 = vector.load %arg12[%c0_22, %c0_23, %c0_24] : memref<8x8x4xf32, #tpu.memory_space<vmem>>, vector<8x8x4xf32>
    tpu.vector_store %arg12[%c0_22, %c0_23, %c0_24], %30 {strides = array<i32>} : memref<8x8x4xf32, #tpu.memory_space<vmem>>, vector<8x8x4xf32>,
    %c0_25 = arith.constant 0 : index
    %c0_26 = arith.constant 0 : index
    %c0_27 = arith.constant 0 : index
    %32 = vector.load %arg10[%c0_25, %c0_26, %c0_27] : memref<8x8x1xf32, #tpu.memory_space<vmem>>, vector<8x8x1xf32>
    tpu.vector_store %arg10[%c0_25, %c0_26, %c0_27], %14 {strides = array<i32>} : memref<8x8x1xf32, #tpu.memory_space<vmem>>, vector<8x8x1xf32>,
    %c0_i32_28 = arith.constant 0 : i32
    %33 = arith.cmpi eq, %arg2, %c0_i32_28 : i32
    %34 = arith.extui %33 : i1 to i32
    %c0_i32_29 = arith.constant 0 : i32
    %35 = arith.cmpi ne, %34, %c0_i32_29 : i32
    scf.if %35 {
      %c0_30 = arith.constant 0 : index
      %c0_31 = arith.constant 0 : index
      %c0_32 = arith.constant 0 : index
      %36 = vector.load %arg11[%c0_30, %c0_31, %c0_32] : memref<8x8x1xf32, #tpu.memory_space<vmem>>, vector<8x8x1xf32>
      %37 = tpu.reciprocal %36 {approx = true} : vector<8x8x1xf32> -> vector<8x8x1xf32>
      %c0_33 = arith.constant 0 : index
      %c0_34 = arith.constant 0 : index
      %c0_35 = arith.constant 0 : index
      %38 = vector.load %arg12[%c0_33, %c0_34, %c0_35] : memref<8x8x4xf32, #tpu.memory_space<vmem>>, vector<8x8x4xf32>
      %39 = vector.broadcast %37 : vector<8x8x1xf32> to vector<8x8x4xf32>
      %40 = arith.mulf %38, %39 : vector<8x8x4xf32>
      %41 = vector.extract_strided_slice %40 {offsets = [0, 0, 0], sizes = [1, 8, 4], strides = [1, 1, 1]} : vector<8x8x4xf32> to vector<1x8x4xf32>
      %42 = vector.shape_cast %41 : vector<1x8x4xf32> to vector<8x4xf32>
      %43 = vector.extract_strided_slice %40 {offsets = [1, 0, 0], sizes = [1, 8, 4], strides = [1, 1, 1]} : vector<8x8x4xf32> to vector<1x8x4xf32>
      %44 = vector.shape_cast %43 : vector<1x8x4xf32> to vector<8x4xf32>
      %45 = vector.extract_strided_slice %40 {offsets = [2, 0, 0], sizes = [1, 8, 4], strides = [1, 1, 1]} : vector<8x8x4xf32> to vector<1x8x4xf32>
      %46 = vector.shape_cast %45 : vector<1x8x4xf32> to vector<8x4xf32>
      %47 = vector.extract_strided_slice %40 {offsets = [3, 0, 0], sizes = [1, 8, 4], strides = [1, 1, 1]} : vector<8x8x4xf32> to vector<1x8x4xf32>
      %48 = vector.shape_cast %47 : vector<1x8x4xf32> to vector<8x4xf32>
      %49 = vector.extract_strided_slice %40 {offsets = [4, 0, 0], sizes = [1, 8, 4], strides = [1, 1, 1]} : vector<8x8x4xf32> to vector<1x8x4xf32>
      %50 = vector.shape_cast %49 : vector<1x8x4xf32> to vector<8x4xf32>
      %51 = vector.extract_strided_slice %40 {offsets = [5, 0, 0], sizes = [1, 8, 4], strides = [1, 1, 1]} : vector<8x8x4xf32> to vector<1x8x4xf32>
      %52 = vector.shape_cast %51 : vector<1x8x4xf32> to vector<8x4xf32>
      %53 = vector.extract_strided_slice %40 {offsets = [6, 0, 0], sizes = [1, 8, 4], strides = [1, 1, 1]} : vector<8x8x4xf32> to vector<1x8x4xf32>
      %54 = vector.shape_cast %53 : vector<1x8x4xf32> to vector<8x4xf32>
      %55 = vector.extract_strided_slice %40 {offsets = [7, 0, 0], sizes = [1, 8, 4], strides = [1, 1, 1]} : vector<8x8x4xf32> to vector<1x8x4xf32>
      %56 = vector.shape_cast %55 : vector<1x8x4xf32> to vector<8x4xf32>
      %57 = tpu.concatenate %42, %44, %46, %48, %50, %52, %54, %56 in 1 : vector<8x4xf32>, vector<8x4xf32>, vector<8x4xf32>, vector<8x4xf32>, vector<8x4xf32>, vector<8x4xf32>, vector<8x4xf32>, vector<8x4xf32> -> vector<8x32xf32>
      %c0_36 = arith.constant 0 : index
      %c0_37 = arith.constant 0 : index
      %c0_38 = arith.constant 0 : index
      %58 = vector.load %arg6[%c0_36, %c0_37, %c0_38] : memref<1x8x32xf32, #tpu.memory_space<vmem>>, vector<1x8x32xf32>
      %59 = vector.shape_cast %58 : vector<1x8x32xf32> to vector<8x32xf32>
      %60 = vector.shape_cast %57 : vector<8x32xf32> to vector<1x8x32xf32>
      tpu.vector_store %arg6[%c0_36, %c0_37, %c0_38], %60 {strides = array<i32>} : memref<1x8x32xf32, #tpu.memory_space<vmem>>, vector<1x8x32xf32>,
    } else {
    }
    return
  }
  func.func @transform_0(%arg0: i32, %arg1: i32, %arg2: i32) -> (i32, i32, i32) {
    %c0_i32 = arith.constant 0 : i32
    %c0_i32_0 = arith.constant 0 : i32
    %c0_i32_1 = arith.constant 0 : i32
    return %arg0, %c0_i32, %c0_i32_0 : i32, i32, i32
  }
  func.func @transform_1(%arg0: i32, %arg1: i32, %arg2: i32) -> (i32, i32, i32) {
    %c0_i32 = arith.constant 0 : i32
    %c0_i32_0 = arith.constant 0 : i32
    %c0_i32_1 = arith.constant 0 : i32
    %c0_i32_2 = arith.constant 0 : i32
    return %c0_i32, %c0_i32_0, %c0_i32_1 : i32, i32, i32
  }
  func.func @transform_2(%arg0: i32, %arg1: i32, %arg2: i32) -> (i32, i32, i32) {
    %c0_i32 = arith.constant 0 : i32
    %c0_i32_0 = arith.constant 0 : i32
    %c0_i32_1 = arith.constant 0 : i32
    %c0_i32_2 = arith.constant 0 : i32
    return %c0_i32, %c0_i32_0, %c0_i32_1 : i32, i32, i32
  }
  func.func @transform_3(%arg0: i32, %arg1: i32, %arg2: i32) -> (i32, i32, i32) {
    %c0_i32 = arith.constant 0 : i32
    %c0_i32_0 = arith.constant 0 : i32
    return %arg0, %c0_i32, %arg1 : i32, i32, i32
  }
}

</mosaic_0001>

<llo_original>
// kernel: tpu_custom_call.1
$region0: #{tpu_custom_call.1}
  #allocation0 [shape = 'u32[]', space=smem, size = 0x4, offset = 0x4, fixed_abs, tag = 'smem constant byte address 0x4 - core index']
  #allocation1 [shape = 'u32[72,128]{1,0:T(1,128)}', space=vmem, size = 0x9000, scoped, tag = 'internal scratch']
  #allocation2 [shape = 'f32[8,8,4]{2,1,0:T(8,128)}', space=vmem, size = 0x8000, scoped, tag = 'scratch operand']
  #allocation3 [shape = 'f32[8,8,4]{2,1,0:T(8,128)}', space=vmem, size = 0x8000, scoped, tag = 'scratch operand']
  #allocation4 [shape = 'f32[8,8,4]{2,1,0:T(8,128)}', space=vmem, size = 0x8000, scoped, tag = 'scratch operand']
  #allocation5 [shape = 'f32[8,8,1]{2,1,0:T(8,128)}', space=vmem, size = 0x8000, scoped, tag = 'scratch operand']
  #allocation6 [shape = 'f32[8,8,1]{2,1,0:T(8,128)}', space=vmem, size = 0x8000, scoped, tag = 'scratch operand']
  #allocation7 [shape = 'f32[8,8,4]{2,1,0:T(8,128)}', space=vmem, size = 0x8000, scoped, tag = 'scratch operand']
  %s0 = inlined_call_operand.hbm [shape: f32[2,8,32], index: 0, kind: input, shape index: {}]
  %s1 = inlined_call_operand.hbm [shape: f32[1,32,96], index: 1, kind: input, shape index: {}]
  %s2 = inlined_call_operand.vmem [shape: f32[1,1,96], index: 2, kind: input, shape index: {}]
  %s3 = inlined_call_operand.hbm [shape: f32[2,8,32], index: 3, kind: output, shape index: {}]
  %s4 = sld [smem:[#allocation0]]
  $region61: #{tpu_custom_call.1} parent=0
    _
  %s6 = ssub.s32 1, %s4
  %s7 = scalar_select 0, %s6, %s4
  $region1: #{tpu_custom_call.1} parent=0
    #allocation8 [shape = 'u8[8192]{0}', space=vmem, size = 0x2000, scoped, tag = 'input window, operand 0']
    #allocation9 [shape = 's32[2]{0}', space=sflag, size = 0x8, scoped, tag = 'scoped memory for tpu_custom_call.1']
    #allocation10 [shape = 's32[2]{0}', space=sflag, size = 0x8, scoped, tag = 'scoped memory for tpu_custom_call.1']
    #allocation11 [shape = 'u8[16384]{0}', space=vmem, size = 0x4000, scoped, tag = 'input window, operand 1, single buffered']
    #allocation12 [shape = 's32[1]{0}', space=sflag, size = 0x4, scoped, tag = 'scoped memory for tpu_custom_call.1']
    #allocation13 [shape = 'u8[8192]{0}', space=vmem, size = 0x2000, scoped, tag = 'output window, operand 0']
    %8 = vsyncpa [#allocation9], 0
    %s9 = scalar_lea.sflag [#allocation9], 1
    %10 = vsyncpa %s9, 0
    %11 = vsyncpa [#allocation12], 0
    %12 = vsyncpa [#allocation10], 0
    %s13 = scalar_lea.sflag [#allocation10], 1
    %14 = vsyncpa %s13, 0
    loop: start=0, step=1, limit=4
    $region2: #{tpu_custom_call.1} parent=1 // loop_pre_header
      _
    $region3: #{tpu_custom_call.1} parent=1 // loop_header
      %s16 = sphi 0, %s20
      %p17 = scmp.ge.s32.totalorder %s16, 4
      %s23 = sphi 0, %s42
      %s24 = sphi 0, %s38
      %s25 = sphi 0, %s34
      %s26 = sphi 0, %s23
      %s27 = sphi 0, %s24
      %s28 = sphi 0, %s25
      %s29 = sphi 0, %s26
      %s30 = sphi 0, %s27
      %s31 = sphi 0, %s28
      %s45 = sphi 0, %s47
      %s48 = sphi 0, %s45
      %s49 = sphi 0, %s48
      %s65 = sphi 0, %s49
      %s69 = sphi 0, %s69
      %s71 = sphi 0, %s69
      %s72 = sphi 0, %s71
      %s86 = sphi 0, %s72
      %s90 = sphi 0, %s90
      %s92 = sphi 0, %s90
      %s93 = sphi 0, %s92
      %s107 = sphi 0, %s93
      %s115 = sphi 0, %s117
      %s118 = sphi 0, %s115
      %s119 = sphi 0, %s118
      %s135 = sphi 0, %s119
    $region4: #{tpu_custom_call.1} parent=1 // loop_header_branch
      %19 = sbr.rel (%p17) target = $region8
    $region5: #{tpu_custom_call.1} parent=1 // loop_body
      %s21 = ssub.s32 %s16, 1
      %s22 = ssub.s32 %s16, 2
      %s32 = sadd.s32 1, %s25
      %p33 = scmp.ge.s32.totalorder %s32, 1
      %s34 = scalar_select %p33, 0, %s32
      %s35 = sadd.s32 1, %s24
      %s36 = scalar_select %p33, %s35, %s24
      %p37 = scmp.ge.s32.totalorder %s36, 1
      %s38 = scalar_select %p37, 0, %s36
      %s39 = sadd.s32 1, %s23
      %s40 = scalar_select %p37, %s39, %s23
      %p41 = scmp.ge.s32.totalorder %s40, 2
      %s42 = scalar_select %p41, 0, %s40
      %s43 = ssub.s32 %s23, %s42
      %p44 = scmp.eq.s32.totalorder %s43, 0
      %s46 = sadd.s32 %s45, 1
      %s47 = scalar_select %p44, %s45, %s46
      %p50 = pneg %p44
      %p51 = scmp.eq.s32.totalorder %s16, 1
      %p52 = por %p50, %p51
      %p53 = scmp.ne.s32.totalorder %s45, %s48
      %p54 = scmp.eq.s32.totalorder %s16, 0
      %p55 = por %p53, %p54
      %p56 = scmp.ne.s32.totalorder %s45, %s48
      %p57 = scmp.eq.s32.totalorder %s21, 1
      %p58 = por %p56, %p57
      %p59 = scmp.ne.s32.totalorder %s48, %s49
      %p60 = scmp.eq.s32.totalorder %s21, 0
      %p61 = por %p59, %p60
      %p62 = scmp.ne.s32.totalorder %s48, %s49
      %p63 = scmp.eq.s32.totalorder %s22, 1
      %p64 = por %p62, %p63
      %p66 = scmp.ne.s32.totalorder %s49, %s65
      %p67 = scmp.eq.s32.totalorder %s22, 0
      %p68 = por %p66, %p67
      %s70 = sadd.s32 %s69, 1
      %p73 = scmp.eq.s32.totalorder %s16, 1
      %p74 = scmp.ne.s32.totalorder %s69, %s71
      %p75 = scmp.eq.s32.totalorder %s16, 0
      %p76 = por %p74, %p75
      %p77 = scmp.ne.s32.totalorder %s69, %s71
      %p78 = scmp.eq.s32.totalorder %s21, 1
      %p79 = por %p77, %p78
      %p80 = scmp.ne.s32.totalorder %s71, %s72
      %p81 = scmp.eq.s32.totalorder %s21, 0
      %p82 = por %p80, %p81
      %p83 = scmp.ne.s32.totalorder %s71, %s72
      %p84 = scmp.eq.s32.totalorder %s22, 1
      %p85 = por %p83, %p84
      %p87 = scmp.ne.s32.totalorder %s72, %s86
      %p88 = scmp.eq.s32.totalorder %s22, 0
      %p89 = por %p87, %p88
      %s91 = sadd.s32 %s90, 1
      %p94 = scmp.eq.s32.totalorder %s16, 1
      %p95 = scmp.ne.s32.totalorder %s90, %s92
      %p96 = scmp.eq.s32.totalorder %s16, 0
      %p97 = por %p95, %p96
      %p98 = scmp.ne.s32.totalorder %s90, %s92
      %p99 = scmp.eq.s32.totalorder %s21, 1
      %p100 = por %p98, %p99
      %p101 = scmp.ne.s32.totalorder %s92, %s93
      %p102 = scmp.eq.s32.totalorder %s21, 0
      %p103 = por %p101, %p102
      %p104 = scmp.ne.s32.totalorder %s92, %s93
      %p105 = scmp.eq.s32.totalorder %s22, 1
      %p106 = por %p104, %p105
      %p108 = scmp.ne.s32.totalorder %s93, %s107
      %p109 = scmp.eq.s32.totalorder %s22, 0
      %p110 = por %p108, %p109
      %s111 = ssub.s32 %s23, %s42
      %s112 = ssub.s32 %s24, %s38
      %s113 = sor.u32 %s111, %s112
      %p114 = scmp.eq.s32.totalorder %s113, 0
      %s116 = sadd.s32 %s115, 1
      %s117 = scalar_select %p114, %s115, %s116
      %p120 = pneg %p114
      %p121 = scmp.eq.s32.totalorder %s16, 1
      %p122 = por %p120, %p121
      %p123 = scmp.ne.s32.totalorder %s115, %s118
      %p124 = scmp.eq.s32.totalorder %s16, 0
      %p125 = por %p123, %p124
      %p126 = scmp.ne.s32.totalorder %s115, %s118
      %p127 = scmp.eq.s32.totalorder %s21, 1
      %p128 = por %p126, %p127
      %p129 = scmp.ne.s32.totalorder %s118, %s119
      %p130 = scmp.eq.s32.totalorder %s21, 0
      %p131 = por %p129, %p130
      %p132 = scmp.ne.s32.totalorder %s118, %s119
      %p133 = scmp.eq.s32.totalorder %s22, 1
      %p134 = por %p132, %p133
      %p136 = scmp.ne.s32.totalorder %s119, %s135
      %p137 = scmp.eq.s32.totalorder %s22, 0
      %p138 = por %p136, %p137
      %p139 = scmp.le.s32.totalorder 1, %s16
      %p140 = scmp.lt.s32.totalorder %s16, 3
      %p141 = pnand %p139, %p140
      %p142 = pneg %p141
      // Predicated region
      $region9: #{tpu_custom_call.1} parent=5 // pred_check
        _
      $region10: #{tpu_custom_call.1} parent=5 // pred_check_branch
        %144 = sbr.rel (%p141) target = $region12
      $region11: #{tpu_custom_call.1} parent=5 // pred_region
        %s145 = ssub.s32 %s16, 1
        // Predicated region
        $region13: #{tpu_custom_call.1} parent=11 // pred_check
          %p146 = pneg %p82
        $region14: #{tpu_custom_call.1} parent=11 // pred_check_branch
          %148 = sbr.rel (%p146) target = $region16
        $region15: #{tpu_custom_call.1} parent=11 // pred_region
          %150 = vsyncadd [#allocation12], 0
          %s151 = sshll.u32 %s1, 4
          %s152 = int_to_ptr.hbm [resolvable:$true] %s151
          %s153 = sshll.u32 [#allocation11], 4
          %s154 = int_to_ptr.vmem [resolvable:$true] %s153
          %159 = dma.hbm_to_vmem [thread:$0]  %s152, 512, %s154, [#allocation12], 128, 128, 8
        $region16: #{tpu_custom_call.1} parent=11 // pred_fallthru
          _
        // Predicated region
        $region17: #{tpu_custom_call.1} parent=11 // pred_check
          %p160 = pneg %p103
        $region18: #{tpu_custom_call.1} parent=11 // pred_check_branch
          %162 = sbr.rel (%p160) target = $region20
        $region19: #{tpu_custom_call.1} parent=11 // pred_region
          _
        $region20: #{tpu_custom_call.1} parent=11 // pred_fallthru
          _
      $region12: #{tpu_custom_call.1} parent=5 // pred_fallthru
        _
      %p163 = scmp.lt.s32.totalorder %s16, 2
      // Predicated region
      $region21: #{tpu_custom_call.1} parent=5 // pred_check
        %p164 = pneg %p163
      $region22: #{tpu_custom_call.1} parent=5 // pred_check_branch
        %166 = sbr.rel (%p164) target = $region24
      $region23: #{tpu_custom_call.1} parent=5 // pred_region
        // Predicated region
        $region25: #{tpu_custom_call.1} parent=23 // pred_check
          %p167 = pneg %p55
        $region26: #{tpu_custom_call.1} parent=23 // pred_check_branch
          %169 = sbr.rel (%p167) target = $region28
        $region27: #{tpu_custom_call.1} parent=23 // pred_region
          %s170 = sand.u32 %s45, 1
          %s171 = scalar_lea.sflag [#allocation9], %s170
          %s172 = sand.u32 %s45, 1
          %s173 = smul.addr %s172, 8
          %s174 = scalar_lea.vmem [#allocation8], %s173
          %176 = vsyncadd %s171, 0
          %s177 = smul.addr %s23, 8
          %s178 = scalar_lea.hbm %s0, %s177
          %s180 = sshll.u32 %s178, 4
          %s181 = int_to_ptr.hbm [resolvable:$true] %s180
          %s182 = sshll.u32 %s174, 4
          %s183 = int_to_ptr.vmem [resolvable:$true] %s182
          %185 = dma.hbm_to_vmem [thread:$0]  %s181, 128, %s183, %s171
        $region28: #{tpu_custom_call.1} parent=23 // pred_fallthru
          _
      $region24: #{tpu_custom_call.1} parent=5 // pred_fallthru
        _
      %p186 = scmp.le.s32.totalorder 1, %s16
      %p187 = scmp.lt.s32.totalorder %s16, 3
      %p188 = pnand %p186, %p187
      %p189 = pneg %p188
      // Predicated region
      $region29: #{tpu_custom_call.1} parent=5 // pred_check
        _
      $region30: #{tpu_custom_call.1} parent=5 // pred_check_branch
        %191 = sbr.rel (%p188) target = $region32
      $region31: #{tpu_custom_call.1} parent=5 // pred_region
        %s192 = ssub.s32 %s16, 1
        %s193 = sand.u32 %s48, 1
        %s194 = scalar_lea.sflag [#allocation9], %s193
        %s195 = sand.u32 %s48, 1
        %s196 = smul.addr %s195, 8
        %s197 = scalar_lea.vmem [#allocation8], %s196
        // Predicated region
        $region33: #{tpu_custom_call.1} parent=31 // pred_check
          %p198 = pneg %p61
        $region34: #{tpu_custom_call.1} parent=31 // pred_check_branch
          %200 = sbr.rel (%p198) target = $region36
        $region35: #{tpu_custom_call.1} parent=31 // pred_region
          %202 = dma.done %s194, 128
        $region36: #{tpu_custom_call.1} parent=31 // pred_fallthru
          _
        // Predicated region
        $region37: #{tpu_custom_call.1} parent=31 // pred_check
          %p203 = pneg %p82
        $region38: #{tpu_custom_call.1} parent=31 // pred_check_branch
          %205 = sbr.rel (%p203) target = $region40
        $region39: #{tpu_custom_call.1} parent=31 // pred_region
          %207 = dma.done [#allocation12], 512
        $region40: #{tpu_custom_call.1} parent=31 // pred_fallthru
          _
        %s208 = sand.u32 %s48, 1
        %s209 = scalar_lea.sflag [#allocation9], %s208
        %s210 = sand.u32 %s48, 1
        %s211 = smul.addr %s210, 8
        %s212 = scalar_lea.vmem [#allocation8], %s211
        %p213 = pneg %p61
        %p214 = pneg %p58
        %p215 = pneg %p82
        %p216 = pneg %p79
        %p217 = pneg %p103
        %p218 = pneg %p100
        %p219 = pneg %p131
        %p220 = pneg %p128
        %s221 = sand.u32 %s118, 1
        %s222 = scalar_lea.sflag [#allocation10], %s221
        %s223 = sand.u32 %s118, 1
        %s224 = smul.addr %s223, 8
        %s225 = scalar_lea.vmem [#allocation13], %s224
        %p226 = scmp.eq.s32.totalorder %s28, 0
        // Predicated region
        $region41: #{tpu_custom_call.1} parent=31 // pred_check
          %p227 = pneg %p226
        $region42: #{tpu_custom_call.1} parent=31 // pred_check_branch
          %229 = sbr.rel (%p227) target = $region44
        $region43: #{tpu_custom_call.1} parent=31 // pred_region
          %v230 = vld [vmem:[%s197] sm:$0xff]
          %s231 = smul.u32 %s27, 32
          %s232 = scalar_lea.vmem [#allocation11], %s231
          %v233 = vld [vmem:[%s232] sm:$0xff]
          %v234 = vld [vmem:[%s232 + $0x8] sm:$0xff]
          %v235 = vld [vmem:[%s232 + $0x10] sm:$0xff]
          %v236 = vld [vmem:[%s232 + $0x18] sm:$0xff]
          %s237 = scalar_lea.vmem %s2, %s27
          %v238 = vld [vmem:[%s237] sm:$0x1]
          %v240 = vperm.slane %v238, 0
          %vm242 = vcmask 261120
          %v244 = vsel %vm242, %v230, 0
          %246 = vmatpush.msra.mxu0 0.0
          %247 = vmatpush.msra.mxu0 0.0
          %248 = vmatpush.msra.mxu0 0.0
          %249 = vmatpush.msra.mxu0 0.0
          %250 = vmatpush.msra.mxu0 0.0
          %251 = vmatpush.msra.mxu0 0.0
          %252 = vmatpush.msra.mxu0 0.0
          %253 = vmatpush.msra.mxu0 0.0
          %254 = vmatpush.msra.mxu0 0.0
          %255 = vmatpush.msra.mxu0 0.0
          %256 = vmatpush.msra.mxu0 0.0
          %257 = vmatpush.msra.mxu0 0.0
          %258 = vmatpush.msra.mxu0 %v236
          %259 = vmatpush.msra.mxu0 %v235
          %260 = vmatpush.msra.mxu0 %v234
          %261 = vmatpush.msra.mxu0 %v233
          %262 = vmatmul.f32.gmra.mxu0 %v244
          %v263 = vpop.f32.mrf.mxu0
          %v264 = vadd.f32 %v240, %v263
          %265 = vdwg.mxu0
          %vm266 = vcmask 31744
          %267 = vst.msk [vmem:[#allocation2] sm:$0xff] %vm266, %v264
          %269 = vrot.lane.b32.xlu0 %v264, 96
          %v270 = vpop.permute.xlu0 %269
          %272 = vst.msk [vmem:[#allocation3] sm:$0xff] %vm266, %v270
          %273 = vrot.lane.b32.xlu0 %v264, 64
          %v274 = vpop.permute.xlu0 %273
          %276 = vst.msk [vmem:[#allocation4] sm:$0xff] %vm266, %v274
          %277 = vrot.lane.b32.xlu0 %v264, 124
          %v278 = vpop.permute.xlu0 %277
          %s280 = scalar_lea.vmem [#allocation2], 8
          %281 = vst.msk [vmem:[%s280] sm:$0xff] %vm266, %v278
          %282 = vrot.lane.b32.xlu0 %v264, 92
          %v283 = vpop.permute.xlu0 %282
          %s285 = scalar_lea.vmem [#allocation3], 8
          %286 = vst.msk [vmem:[%s285] sm:$0xff] %vm266, %v283
          %287 = vrot.lane.b32.xlu0 %v264, 60
          %v288 = vpop.permute.xlu0 %287
          %s290 = scalar_lea.vmem [#allocation4], 8
          %291 = vst.msk [vmem:[%s290] sm:$0xff] %vm266, %v288
          %292 = vrot.lane.b32.xlu0 %v264, 120
          %v293 = vpop.permute.xlu0 %292
          %s295 = scalar_lea.vmem [#allocation2], 16
          %296 = vst.msk [vmem:[%s295] sm:$0xff] %vm266, %v293
          %297 = vrot.lane.b32.xlu0 %v264, 88
          %v298 = vpop.permute.xlu0 %297
          %s300 = scalar_lea.vmem [#allocation3], 16
          %301 = vst.msk [vmem:[%s300] sm:$0xff] %vm266, %v298
          %302 = vrot.lane.b32.xlu0 %v264, 56
          %v303 = vpop.permute.xlu0 %302
          %s305 = scalar_lea.vmem [#allocation4], 16
          %306 = vst.msk [vmem:[%s305] sm:$0xff] %vm266, %v303
          %307 = vrot.lane.b32.xlu0 %v264, 116
          %v308 = vpop.permute.xlu0 %307
          %s310 = scalar_lea.vmem [#allocation2], 24
          %311 = vst.msk [vmem:[%s310] sm:$0xff] %vm266, %v308
          %312 = vrot.lane.b32.xlu0 %v264, 84
          %v313 = vpop.permute.xlu0 %312
          %s315 = scalar_lea.vmem [#allocation3], 24
          %316 = vst.msk [vmem:[%s315] sm:$0xff] %vm266, %v313
          %317 = vrot.lane.b32.xlu0 %v264, 52
          %v318 = vpop.permute.xlu0 %317
          %s320 = scalar_lea.vmem [#allocation4], 24
          %321 = vst.msk [vmem:[%s320] sm:$0xff] %vm266, %v318
          %322 = vrot.lane.b32.xlu0 %v264, 112
          %v323 = vpop.permute.xlu0 %322
          %s325 = scalar_lea.vmem [#allocation2], 32
          %326 = vst.msk [vmem:[%s325] sm:$0xff] %vm266, %v323
          %327 = vrot.lane.b32.xlu0 %v264, 80
          %v328 = vpop.permute.xlu0 %327
          %s330 = scalar_lea.vmem [#allocation3], 32
          %331 = vst.msk [vmem:[%s330] sm:$0xff] %vm266, %v328
          %332 = vrot.lane.b32.xlu0 %v264, 48
          %v333 = vpop.permute.xlu0 %332
          %s335 = scalar_lea.vmem [#allocation4], 32
          %336 = vst.msk [vmem:[%s335] sm:$0xff] %vm266, %v333
          %337 = vrot.lane.b32.xlu0 %v264, 108
          %v338 = vpop.permute.xlu0 %337
          %s340 = scalar_lea.vmem [#allocation2], 40
          %341 = vst.msk [vmem:[%s340] sm:$0xff] %vm266, %v338
          %342 = vrot.lane.b32.xlu0 %v264, 76
          %v343 = vpop.permute.xlu0 %342
          %s345 = scalar_lea.vmem [#allocation3], 40
          %346 = vst.msk [vmem:[%s345] sm:$0xff] %vm266, %v343
          %347 = vrot.lane.b32.xlu0 %v264, 44
          %v348 = vpop.permute.xlu0 %347
          %s350 = scalar_lea.vmem [#allocation4], 40
          %351 = vst.msk [vmem:[%s350] sm:$0xff] %vm266, %v348
          %352 = vrot.lane.b32.xlu0 %v264, 104
          %v353 = vpop.permute.xlu0 %352
          %s355 = scalar_lea.vmem [#allocation2], 48
          %356 = vst.msk [vmem:[%s355] sm:$0xff] %vm266, %v353
          %357 = vrot.lane.b32.xlu0 %v264, 72
          %v358 = vpop.permute.xlu0 %357
          %s360 = scalar_lea.vmem [#allocation3], 48
          %361 = vst.msk [vmem:[%s360] sm:$0xff] %vm266, %v358
          %362 = vrot.lane.b32.xlu0 %v264, 40
          %v363 = vpop.permute.xlu0 %362
          %s365 = scalar_lea.vmem [#allocation4], 48
          %366 = vst.msk [vmem:[%s365] sm:$0xff] %vm266, %v363
          %367 = vrot.lane.b32.xlu0 %v264, 100
          %v368 = vpop.permute.xlu0 %367
          %s370 = scalar_lea.vmem [#allocation2], 56
          %371 = vst.msk [vmem:[%s370] sm:$0xff] %vm266, %v368
          %372 = vrot.lane.b32.xlu0 %v264, 68
          %v373 = vpop.permute.xlu0 %372
          %s375 = scalar_lea.vmem [#allocation3], 56
          %376 = vst.msk [vmem:[%s375] sm:$0xff] %vm266, %v373
          %377 = vrot.lane.b32.xlu0 %v264, 36
          %v378 = vpop.permute.xlu0 %377
          %s380 = scalar_lea.vmem [#allocation4], 56
          %381 = vst.msk [vmem:[%s380] sm:$0xff] %vm266, %v378
          %vm382 = vcmask 7168
          %383 = vst.msk [vmem:[#allocation5] sm:$0xff] %vm382, -inf
          %384 = vst.msk [vmem:[#allocation5 + $0x8] sm:$0xff] %vm382, -inf
          %385 = vst.msk [vmem:[#allocation5 + $0x10] sm:$0xff] %vm382, -inf
          %386 = vst.msk [vmem:[#allocation5 + $0x18] sm:$0xff] %vm382, -inf
          %387 = vst.msk [vmem:[#allocation5 + $0x20] sm:$0xff] %vm382, -inf
          %388 = vst.msk [vmem:[#allocation5 + $0x28] sm:$0xff] %vm382, -inf
          %389 = vst.msk [vmem:[#allocation5 + $0x30] sm:$0xff] %vm382, -inf
          %390 = vst.msk [vmem:[#allocation5 + $0x38] sm:$0xff] %vm382, -inf
          %391 = vst.msk [vmem:[#allocation6] sm:$0xff] %vm382, 0.0
          %392 = vst.msk [vmem:[#allocation6 + $0x8] sm:$0xff] %vm382, 0.0
          %393 = vst.msk [vmem:[#allocation6 + $0x10] sm:$0xff] %vm382, 0.0
          %394 = vst.msk [vmem:[#allocation6 + $0x18] sm:$0xff] %vm382, 0.0
          %395 = vst.msk [vmem:[#allocation6 + $0x20] sm:$0xff] %vm382, 0.0
          %396 = vst.msk [vmem:[#allocation6 + $0x28] sm:$0xff] %vm382, 0.0
          %397 = vst.msk [vmem:[#allocation6 + $0x30] sm:$0xff] %vm382, 0.0
          %398 = vst.msk [vmem:[#allocation6 + $0x38] sm:$0xff] %vm382, 0.0
          %399 = vst.msk [vmem:[#allocation7] sm:$0xff] %vm266, 0.0
          %400 = vst.msk [vmem:[#allocation7 + $0x8] sm:$0xff] %vm266, 0.0
          %401 = vst.msk [vmem:[#allocation7 + $0x10] sm:$0xff] %vm266, 0.0
          %402 = vst.msk [vmem:[#allocation7 + $0x18] sm:$0xff] %vm266, 0.0
          %403 = vst.msk [vmem:[#allocation7 + $0x20] sm:$0xff] %vm266, 0.0
          %404 = vst.msk [vmem:[#allocation7 + $0x28] sm:$0xff] %vm266, 0.0
          %405 = vst.msk [vmem:[#allocation7 + $0x30] sm:$0xff] %vm266, 0.0
          %406 = vst.msk [vmem:[#allocation7 + $0x38] sm:$0xff] %vm266, 0.0
        $region44: #{tpu_custom_call.1} parent=31 // pred_fallthru
          _
        %s407 = smul.u32 %s28, 8
        %s408 = scalar_lea.vmem [#allocation3], %s407
        %v409 = vld [vmem:[%s408] sm:$0xff]
        %v410 = vld [vmem:[%s408 + $0x8] sm:$0xff]
        %v411 = vld [vmem:[%s408 + $0x10] sm:$0xff]
        %v412 = vld [vmem:[%s408 + $0x18] sm:$0xff]
        %v413 = vld [vmem:[%s408 + $0x20] sm:$0xff]
        %v414 = vld [vmem:[%s408 + $0x28] sm:$0xff]
        %v415 = vld [vmem:[%s408 + $0x30] sm:$0xff]
        %v416 = vld [vmem:[%s408 + $0x38] sm:$0xff]
        %s417 = scalar_lea.vmem [#allocation4], %s407
        %v418 = vld [vmem:[%s417] sm:$0xff]
        %v419 = vld [vmem:[%s417 + $0x8] sm:$0xff]
        %v420 = vld [vmem:[%s417 + $0x10] sm:$0xff]
        %v421 = vld [vmem:[%s417 + $0x18] sm:$0xff]
        %v422 = vld [vmem:[%s417 + $0x20] sm:$0xff]
        %v423 = vld [vmem:[%s417 + $0x28] sm:$0xff]
        %v424 = vld [vmem:[%s417 + $0x30] sm:$0xff]
        %v425 = vld [vmem:[%s417 + $0x38] sm:$0xff]
        %v426 = vld [vmem:[#allocation2] sm:$0xff]
        %v427 = vld [vmem:[#allocation2 + $0x8] sm:$0xff]
        %v428 = vld [vmem:[#allocation2 + $0x10] sm:$0xff]
        %v429 = vld [vmem:[#allocation2 + $0x18] sm:$0xff]
        %v430 = vld [vmem:[#allocation2 + $0x20] sm:$0xff]
        %v431 = vld [vmem:[#allocation2 + $0x28] sm:$0xff]
        %v432 = vld [vmem:[#allocation2 + $0x30] sm:$0xff]
        %v433 = vld [vmem:[#allocation2 + $0x38] sm:$0xff]
        %vm434 = vcmask 31744
        %v436 = vsel %vm434, %v426, 0
        %v439 = vsel %vm434, %v409, 0
        %441 = vmatpush.xpose.msra.mxu0 0.0
        %442 = vmatpush.xpose.msra.mxu0 0.0
        %443 = vmatpush.xpose.msra.mxu0 0.0
        %444 = vmatpush.xpose.msra.mxu0 0.0
        %445 = vmatpush.xpose.msra.mxu0 0.0
        %446 = vmatpush.xpose.msra.mxu0 0.0
        %447 = vmatpush.xpose.msra.mxu0 0.0
        %448 = vmatpush.xpose.msra.mxu0 0.0
        %449 = vmatpush.xpose.msra.mxu0 0.0
        %450 = vmatpush.xpose.msra.mxu0 0.0
        %451 = vmatpush.xpose.msra.mxu0 0.0
        %452 = vmatpush.xpose.msra.mxu0 0.0
        %453 = vmatpush.xpose.msra.mxu0 0.0
        %454 = vmatpush.xpose.msra.mxu0 0.0
        %455 = vmatpush.xpose.msra.mxu0 0.0
        %456 = vmatpush.xpose.msra.mxu0 %v439
        %457 = vmatmul.f32.gmra.mxu0 %v436
        %v458 = vpop.f32.mrf.mxu0
        %v459 = vadd.f32 0.0, %v458
        %460 = vdwg.mxu0
        %v462 = vsel %vm434, %v427, 0
        %v465 = vsel %vm434, %v410, 0
        %467 = vmatpush.xpose.msra.mxu0 0.0
        %468 = vmatpush.xpose.msra.mxu0 0.0
        %469 = vmatpush.xpose.msra.mxu0 0.0
        %470 = vmatpush.xpose.msra.mxu0 0.0
        %471 = vmatpush.xpose.msra.mxu0 0.0
        %472 = vmatpush.xpose.msra.mxu0 0.0
        %473 = vmatpush.xpose.msra.mxu0 0.0
        %474 = vmatpush.xpose.msra.mxu0 0.0
        %475 = vmatpush.xpose.msra.mxu0 0.0
        %476 = vmatpush.xpose.msra.mxu0 0.0
        %477 = vmatpush.xpose.msra.mxu0 0.0
        %478 = vmatpush.xpose.msra.mxu0 0.0
        %479 = vmatpush.xpose.msra.mxu0 0.0
        %480 = vmatpush.xpose.msra.mxu0 0.0
        %481 = vmatpush.xpose.msra.mxu0 0.0
        %482 = vmatpush.xpose.msra.mxu0 %v465
        %483 = vmatmul.f32.gmra.mxu0 %v462
        %v484 = vpop.f32.mrf.mxu0
        %v485 = vadd.f32 0.0, %v484
        %486 = vdwg.mxu0
        %v488 = vsel %vm434, %v428, 0
        %v491 = vsel %vm434, %v411, 0
        %493 = vmatpush.xpose.msra.mxu0 0.0
        %494 = vmatpush.xpose.msra.mxu0 0.0
        %495 = vmatpush.xpose.msra.mxu0 0.0
        %496 = vmatpush.xpose.msra.mxu0 0.0
        %497 = vmatpush.xpose.msra.mxu0 0.0
        %498 = vmatpush.xpose.msra.mxu0 0.0
        %499 = vmatpush.xpose.msra.mxu0 0.0
        %500 = vmatpush.xpose.msra.mxu0 0.0
        %501 = vmatpush.xpose.msra.mxu0 0.0
        %502 = vmatpush.xpose.msra.mxu0 0.0
        %503 = vmatpush.xpose.msra.mxu0 0.0
        %504 = vmatpush.xpose.msra.mxu0 0.0
        %505 = vmatpush.xpose.msra.mxu0 0.0
        %506 = vmatpush.xpose.msra.mxu0 0.0
        %507 = vmatpush.xpose.msra.mxu0 0.0
        %508 = vmatpush.xpose.msra.mxu0 %v491
        %509 = vmatmul.f32.gmra.mxu0 %v488
        %v510 = vpop.f32.mrf.mxu0
        %v511 = vadd.f32 0.0, %v510
        %512 = vdwg.mxu0
        %v514 = vsel %vm434, %v429, 0
        %v517 = vsel %vm434, %v412, 0
        %519 = vmatpush.xpose.msra.mxu0 0.0
        %520 = vmatpush.xpose.msra.mxu0 0.0
        %521 = vmatpush.xpose.msra.mxu0 0.0
        %522 = vmatpush.xpose.msra.mxu0 0.0
        %523 = vmatpush.xpose.msra.mxu0 0.0
        %524 = vmatpush.xpose.msra.mxu0 0.0
        %525 = vmatpush.xpose.msra.mxu0 0.0
        %526 = vmatpush.xpose.msra.mxu0 0.0
        %527 = vmatpush.xpose.msra.mxu0 0.0
        %528 = vmatpush.xpose.msra.mxu0 0.0
        %529 = vmatpush.xpose.msra.mxu0 0.0
        %530 = vmatpush.xpose.msra.mxu0 0.0
        %531 = vmatpush.xpose.msra.mxu0 0.0
        %532 = vmatpush.xpose.msra.mxu0 0.0
        %533 = vmatpush.xpose.msra.mxu0 0.0
        %534 = vmatpush.xpose.msra.mxu0 %v517
        %535 = vmatmul.f32.gmra.mxu0 %v514
        %v536 = vpop.f32.mrf.mxu0
        %v537 = vadd.f32 0.0, %v536
        %538 = vdwg.mxu0
        %v540 = vsel %vm434, %v430, 0
        %v543 = vsel %vm434, %v413, 0
        %545 = vmatpush.xpose.msra.mxu0 0.0
        %546 = vmatpush.xpose.msra.mxu0 0.0
        %547 = vmatpush.xpose.msra.mxu0 0.0
        %548 = vmatpush.xpose.msra.mxu0 0.0
        %549 = vmatpush.xpose.msra.mxu0 0.0
        %550 = vmatpush.xpose.msra.mxu0 0.0
        %551 = vmatpush.xpose.msra.mxu0 0.0
        %552 = vmatpush.xpose.msra.mxu0 0.0
        %553 = vmatpush.xpose.msra.mxu0 0.0
        %554 = vmatpush.xpose.msra.mxu0 0.0
        %555 = vmatpush.xpose.msra.mxu0 0.0
        %556 = vmatpush.xpose.msra.mxu0 0.0
        %557 = vmatpush.xpose.msra.mxu0 0.0
        %558 = vmatpush.xpose.msra.mxu0 0.0
        %559 = vmatpush.xpose.msra.mxu0 0.0
        %560 = vmatpush.xpose.msra.mxu0 %v543
        %561 = vmatmul.f32.gmra.mxu0 %v540
        %v562 = vpop.f32.mrf.mxu0
        %v563 = vadd.f32 0.0, %v562
        %564 = vdwg.mxu0
        %v566 = vsel %vm434, %v431, 0
        %v569 = vsel %vm434, %v414, 0
        %571 = vmatpush.xpose.msra.mxu0 0.0
        %572 = vmatpush.xpose.msra.mxu0 0.0
        %573 = vmatpush.xpose.msra.mxu0 0.0
        %574 = vmatpush.xpose.msra.mxu0 0.0
        %575 = vmatpush.xpose.msra.mxu0 0.0
        %576 = vmatpush.xpose.msra.mxu0 0.0
        %577 = vmatpush.xpose.msra.mxu0 0.0
        %578 = vmatpush.xpose.msra.mxu0 0.0
        %579 = vmatpush.xpose.msra.mxu0 0.0
        %580 = vmatpush.xpose.msra.mxu0 0.0
        %581 = vmatpush.xpose.msra.mxu0 0.0
        %582 = vmatpush.xpose.msra.mxu0 0.0
        %583 = vmatpush.xpose.msra.mxu0 0.0
        %584 = vmatpush.xpose.msra.mxu0 0.0
        %585 = vmatpush.xpose.msra.mxu0 0.0
        %586 = vmatpush.xpose.msra.mxu0 %v569
        %587 = vmatmul.f32.gmra.mxu0 %v566
        %v588 = vpop.f32.mrf.mxu0
        %v589 = vadd.f32 0.0, %v588
        %590 = vdwg.mxu0
        %v592 = vsel %vm434, %v432, 0
        %v595 = vsel %vm434, %v415, 0
        %597 = vmatpush.xpose.msra.mxu0 0.0
        %598 = vmatpush.xpose.msra.mxu0 0.0
        %599 = vmatpush.xpose.msra.mxu0 0.0
        %600 = vmatpush.xpose.msra.mxu0 0.0
        %601 = vmatpush.xpose.msra.mxu0 0.0
        %602 = vmatpush.xpose.msra.mxu0 0.0
        %603 = vmatpush.xpose.msra.mxu0 0.0
        %604 = vmatpush.xpose.msra.mxu0 0.0
        %605 = vmatpush.xpose.msra.mxu0 0.0
        %606 = vmatpush.xpose.msra.mxu0 0.0
        %607 = vmatpush.xpose.msra.mxu0 0.0
        %608 = vmatpush.xpose.msra.mxu0 0.0
        %609 = vmatpush.xpose.msra.mxu0 0.0
        %610 = vmatpush.xpose.msra.mxu0 0.0
        %611 = vmatpush.xpose.msra.mxu0 0.0
        %612 = vmatpush.xpose.msra.mxu0 %v595
        %613 = vmatmul.f32.gmra.mxu0 %v592
        %v614 = vpop.f32.mrf.mxu0
        %v615 = vadd.f32 0.0, %v614
        %616 = vdwg.mxu0
        %v618 = vsel %vm434, %v433, 0
        %v621 = vsel %vm434, %v416, 0
        %623 = vmatpush.xpose.msra.mxu0 0.0
        %624 = vmatpush.xpose.msra.mxu0 0.0
        %625 = vmatpush.xpose.msra.mxu0 0.0
        %626 = vmatpush.xpose.msra.mxu0 0.0
        %627 = vmatpush.xpose.msra.mxu0 0.0
        %628 = vmatpush.xpose.msra.mxu0 0.0
        %629 = vmatpush.xpose.msra.mxu0 0.0
        %630 = vmatpush.xpose.msra.mxu0 0.0
        %631 = vmatpush.xpose.msra.mxu0 0.0
        %632 = vmatpush.xpose.msra.mxu0 0.0
        %633 = vmatpush.xpose.msra.mxu0 0.0
        %634 = vmatpush.xpose.msra.mxu0 0.0
        %635 = vmatpush.xpose.msra.mxu0 0.0
        %636 = vmatpush.xpose.msra.mxu0 0.0
        %637 = vmatpush.xpose.msra.mxu0 0.0
        %638 = vmatpush.xpose.msra.mxu0 %v621
        %639 = vmatmul.f32.gmra.mxu0 %v618
        %v640 = vpop.f32.mrf.mxu0
        %v641 = vadd.f32 0.0, %v640
        %642 = vdwg.mxu0
        %v643 = vld [vmem:[#allocation5] sm:$0xff]
        %v644 = vld [vmem:[#allocation5 + $0x8] sm:$0xff]
        %v645 = vld [vmem:[#allocation5 + $0x10] sm:$0xff]
        %v646 = vld [vmem:[#allocation5 + $0x18] sm:$0xff]
        %v647 = vld [vmem:[#allocation5 + $0x20] sm:$0xff]
        %v648 = vld [vmem:[#allocation5 + $0x28] sm:$0xff]
        %v649 = vld [vmem:[#allocation5 + $0x30] sm:$0xff]
        %v650 = vld [vmem:[#allocation5 + $0x38] sm:$0xff]
        %vm651 = vcmask 64512
        %v652 = vsel %vm651, %v459, -inf
        %653 = vmax.xlane.f32.xlu0 %v652
        %v654 = vpop.xlane.xlu0 %653
        %v655 = vsel %vm651, %v485, -inf
        %656 = vmax.xlane.f32.xlu0 %v655
        %v657 = vpop.xlane.xlu0 %656
        %v658 = vsel %vm651, %v511, -inf
        %659 = vmax.xlane.f32.xlu0 %v658
        %v660 = vpop.xlane.xlu0 %659
        %v661 = vsel %vm651, %v537, -inf
        %662 = vmax.xlane.f32.xlu0 %v661
        %v663 = vpop.xlane.xlu0 %662
        %v664 = vsel %vm651, %v563, -inf
        %665 = vmax.xlane.f32.xlu0 %v664
        %v666 = vpop.xlane.xlu0 %665
        %v667 = vsel %vm651, %v589, -inf
        %668 = vmax.xlane.f32.xlu0 %v667
        %v669 = vpop.xlane.xlu0 %668
        %v670 = vsel %vm651, %v615, -inf
        %671 = vmax.xlane.f32.xlu0 %v670
        %v672 = vpop.xlane.xlu0 %671
        %v673 = vsel %vm651, %v641, -inf
        %674 = vmax.xlane.f32.xlu0 %v673
        %v675 = vpop.xlane.xlu0 %674
        %v676 = vmax.f32 %v643, %v654
        %v677 = vmax.f32 %v644, %v657
        %v678 = vmax.f32 %v645, %v660
        %v679 = vmax.f32 %v646, %v663
        %v680 = vmax.f32 %v647, %v666
        %v681 = vmax.f32 %v648, %v669
        %v682 = vmax.f32 %v649, %v672
        %v683 = vmax.f32 %v650, %v675
        %v684 = vsub.f32 %v643, %v676
        %v685 = vsub.f32 %v644, %v677
        %v686 = vsub.f32 %v645, %v678
        %v687 = vsub.f32 %v646, %v679
        %v688 = vsub.f32 %v647, %v680
        %v689 = vsub.f32 %v648, %v681
        %v690 = vsub.f32 %v649, %v682
        %v691 = vsub.f32 %v650, %v683
        %v692 = vmul.f32 %v684, 1.442695
        %v693 = vpow.pop %v692
        %v694 = vmul.f32 %v685, 1.442695
        %v695 = vpow.pop %v694
        %v696 = vmul.f32 %v686, 1.442695
        %v697 = vpow.pop %v696
        %v698 = vmul.f32 %v687, 1.442695
        %v699 = vpow.pop %v698
        %v700 = vmul.f32 %v688, 1.442695
        %v701 = vpow.pop %v700
        %v702 = vmul.f32 %v689, 1.442695
        %v703 = vpow.pop %v702
        %v704 = vmul.f32 %v690, 1.442695
        %v705 = vpow.pop %v704
        %v706 = vmul.f32 %v691, 1.442695
        %v707 = vpow.pop %v706
        %709 = vset.pattern.permute.xlu0 0
        %710 = vperm.xlu0 %709, %v676
        %v711 = vpop.permute.xlu0 %710
        %714 = vset.pattern.permute.xlu0 0
        %715 = vperm.xlu0 %714, %v677
        %v716 = vpop.permute.xlu0 %715
        %719 = vset.pattern.permute.xlu0 0
        %720 = vperm.xlu0 %719, %v678
        %v721 = vpop.permute.xlu0 %720
        %724 = vset.pattern.permute.xlu0 0
        %725 = vperm.xlu0 %724, %v679
        %v726 = vpop.permute.xlu0 %725
        %729 = vset.pattern.permute.xlu0 0
        %730 = vperm.xlu0 %729, %v680
        %v731 = vpop.permute.xlu0 %730
        %734 = vset.pattern.permute.xlu0 0
        %735 = vperm.xlu0 %734, %v681
        %v736 = vpop.permute.xlu0 %735
        %739 = vset.pattern.permute.xlu0 0
        %740 = vperm.xlu0 %739, %v682
        %v741 = vpop.permute.xlu0 %740
        %744 = vset.pattern.permute.xlu0 0
        %745 = vperm.xlu0 %744, %v683
        %v746 = vpop.permute.xlu0 %745
        %v748 = vsub.f32 %v459, %v711
        %v749 = vsub.f32 %v485, %v716
        %v750 = vsub.f32 %v511, %v721
        %v751 = vsub.f32 %v537, %v726
        %v752 = vsub.f32 %v563, %v731
        %v753 = vsub.f32 %v589, %v736
        %v754 = vsub.f32 %v615, %v741
        %v755 = vsub.f32 %v641, %v746
        %v756 = vmul.f32 %v748, 1.442695
        %v757 = vpow.pop %v756
        %v758 = vmul.f32 %v749, 1.442695
        %v759 = vpow.pop %v758
        %v760 = vmul.f32 %v750, 1.442695
        %v761 = vpow.pop %v760
        %v762 = vmul.f32 %v751, 1.442695
        %v763 = vpow.pop %v762
        %v764 = vmul.f32 %v752, 1.442695
        %v765 = vpow.pop %v764
        %v766 = vmul.f32 %v753, 1.442695
        %v767 = vpow.pop %v766
        %v768 = vmul.f32 %v754, 1.442695
        %v769 = vpow.pop %v768
        %v770 = vmul.f32 %v755, 1.442695
        %v771 = vpow.pop %v770
        %v772 = vld [vmem:[#allocation6] sm:$0xff]
        %v773 = vld [vmem:[#allocation6 + $0x8] sm:$0xff]
        %v774 = vld [vmem:[#allocation6 + $0x10] sm:$0xff]
        %v775 = vld [vmem:[#allocation6 + $0x18] sm:$0xff]
        %v776 = vld [vmem:[#allocation6 + $0x20] sm:$0xff]
        %v777 = vld [vmem:[#allocation6 + $0x28] sm:$0xff]
        %v778 = vld [vmem:[#allocation6 + $0x30] sm:$0xff]
        %v779 = vld [vmem:[#allocation6 + $0x38] sm:$0xff]
        %v780 = vmul.f32 %v693, %v772
        %v781 = vmul.f32 %v695, %v773
        %v782 = vmul.f32 %v697, %v774
        %v783 = vmul.f32 %v699, %v775
        %v784 = vmul.f32 %v701, %v776
        %v785 = vmul.f32 %v703, %v777
        %v786 = vmul.f32 %v705, %v778
        %v787 = vmul.f32 %v707, %v779
        %v788 = vsel %vm651, %v757, 0.0
        %789 = vadd.xlane.f32.xlu0 %v788
        %v790 = vpop.xlane.xlu0 %789
        %v791 = vsel %vm651, %v759, 0.0
        %792 = vadd.xlane.f32.xlu0 %v791
        %v793 = vpop.xlane.xlu0 %792
        %v794 = vsel %vm651, %v761, 0.0
        %795 = vadd.xlane.f32.xlu0 %v794
        %v796 = vpop.xlane.xlu0 %795
        %v797 = vsel %vm651, %v763, 0.0
        %798 = vadd.xlane.f32.xlu0 %v797
        %v799 = vpop.xlane.xlu0 %798
        %v800 = vsel %vm651, %v765, 0.0
        %801 = vadd.xlane.f32.xlu0 %v800
        %v802 = vpop.xlane.xlu0 %801
        %v803 = vsel %vm651, %v767, 0.0
        %804 = vadd.xlane.f32.xlu0 %v803
        %v805 = vpop.xlane.xlu0 %804
        %v806 = vsel %vm651, %v769, 0.0
        %807 = vadd.xlane.f32.xlu0 %v806
        %v808 = vpop.xlane.xlu0 %807
        %v809 = vsel %vm651, %v771, 0.0
        %810 = vadd.xlane.f32.xlu0 %v809
        %v811 = vpop.xlane.xlu0 %810
        %v812 = vadd.f32 %v780, %v790
        %v813 = vadd.f32 %v781, %v793
        %v814 = vadd.f32 %v782, %v796
        %v815 = vadd.f32 %v783, %v799
        %v816 = vadd.f32 %v784, %v802
        %v817 = vadd.f32 %v785, %v805
        %v818 = vadd.f32 %v786, %v808
        %v819 = vadd.f32 %v787, %v811
        %vm820 = vcmask 7168
        %821 = vst.msk [vmem:[#allocation6] sm:$0xff] %vm820, %v812
        %822 = vst.msk [vmem:[#allocation6 + $0x8] sm:$0xff] %vm820, %v813
        %823 = vst.msk [vmem:[#allocation6 + $0x10] sm:$0xff] %vm820, %v814
        %824 = vst.msk [vmem:[#allocation6 + $0x18] sm:$0xff] %vm820, %v815
        %825 = vst.msk [vmem:[#allocation6 + $0x20] sm:$0xff] %vm820, %v816
        %826 = vst.msk [vmem:[#allocation6 + $0x28] sm:$0xff] %vm820, %v817
        %827 = vst.msk [vmem:[#allocation6 + $0x30] sm:$0xff] %vm820, %v818
        %828 = vst.msk [vmem:[#allocation6 + $0x38] sm:$0xff] %vm820, %v819
        %v829 = vld [vmem:[#allocation7] sm:$0xff]
        %v830 = vld [vmem:[#allocation7 + $0x8] sm:$0xff]
        %v831 = vld [vmem:[#allocation7 + $0x10] sm:$0xff]
        %v832 = vld [vmem:[#allocation7 + $0x18] sm:$0xff]
        %v833 = vld [vmem:[#allocation7 + $0x20] sm:$0xff]
        %v834 = vld [vmem:[#allocation7 + $0x28] sm:$0xff]
        %v835 = vld [vmem:[#allocation7 + $0x30] sm:$0xff]
        %v836 = vld [vmem:[#allocation7 + $0x38] sm:$0xff]
        %838 = vset.pattern.permute.xlu0 0
        %839 = vperm.xlu0 %838, %v693
        %v840 = vpop.permute.xlu0 %839
        %843 = vset.pattern.permute.xlu0 0
        %844 = vperm.xlu0 %843, %v695
        %v845 = vpop.permute.xlu0 %844
        %848 = vset.pattern.permute.xlu0 0
        %849 = vperm.xlu0 %848, %v697
        %v850 = vpop.permute.xlu0 %849
        %853 = vset.pattern.permute.xlu0 0
        %854 = vperm.xlu0 %853, %v699
        %v855 = vpop.permute.xlu0 %854
        %858 = vset.pattern.permute.xlu0 0
        %859 = vperm.xlu0 %858, %v701
        %v860 = vpop.permute.xlu0 %859
        %863 = vset.pattern.permute.xlu0 0
        %864 = vperm.xlu0 %863, %v703
        %v865 = vpop.permute.xlu0 %864
        %868 = vset.pattern.permute.xlu0 0
        %869 = vperm.xlu0 %868, %v705
        %v870 = vpop.permute.xlu0 %869
        %873 = vset.pattern.permute.xlu0 0
        %874 = vperm.xlu0 %873, %v707
        %v875 = vpop.permute.xlu0 %874
        %v877 = vmul.f32 %v840, %v829
        %v878 = vmul.f32 %v845, %v830
        %v879 = vmul.f32 %v850, %v831
        %v880 = vmul.f32 %v855, %v832
        %v881 = vmul.f32 %v860, %v833
        %v882 = vmul.f32 %v865, %v834
        %v883 = vmul.f32 %v870, %v835
        %v884 = vmul.f32 %v875, %v836
        %v886 = vsel %vm651, %v757, 0
        %888 = vmatpush.msra.mxu0 0.0
        %889 = vmatpush.msra.mxu0 0.0
        %890 = vmatpush.msra.mxu0 0.0
        %891 = vmatpush.msra.mxu0 0.0
        %892 = vmatpush.msra.mxu0 0.0
        %893 = vmatpush.msra.mxu0 0.0
        %894 = vmatpush.msra.mxu0 0.0
        %895 = vmatpush.msra.mxu0 0.0
        %896 = vmatpush.msra.mxu0 0.0
        %897 = vmatpush.msra.mxu0 0.0
        %898 = vmatpush.msra.mxu0 0.0
        %899 = vmatpush.msra.mxu0 0.0
        %900 = vmatpush.msra.mxu0 0.0
        %901 = vmatpush.msra.mxu0 0.0
        %902 = vmatpush.msra.mxu0 0.0
        %903 = vmatpush.msra.mxu0 %v418
        %904 = vmatmul.f32.gmra.mxu0 %v886
        %v905 = vpop.f32.mrf.mxu0
        %v906 = vadd.f32 0.0, %v905
        %907 = vdwg.mxu0
        %v909 = vsel %vm651, %v759, 0
        %911 = vmatpush.msra.mxu0 0.0
        %912 = vmatpush.msra.mxu0 0.0
        %913 = vmatpush.msra.mxu0 0.0
        %914 = vmatpush.msra.mxu0 0.0
        %915 = vmatpush.msra.mxu0 0.0
        %916 = vmatpush.msra.mxu0 0.0
        %917 = vmatpush.msra.mxu0 0.0
        %918 = vmatpush.msra.mxu0 0.0
        %919 = vmatpush.msra.mxu0 0.0
        %920 = vmatpush.msra.mxu0 0.0
        %921 = vmatpush.msra.mxu0 0.0
        %922 = vmatpush.msra.mxu0 0.0
        %923 = vmatpush.msra.mxu0 0.0
        %924 = vmatpush.msra.mxu0 0.0
        %925 = vmatpush.msra.mxu0 0.0
        %926 = vmatpush.msra.mxu0 %v419
        %927 = vmatmul.f32.gmra.mxu0 %v909
        %v928 = vpop.f32.mrf.mxu0
        %v929 = vadd.f32 0.0, %v928
        %930 = vdwg.mxu0
        %v932 = vsel %vm651, %v761, 0
        %934 = vmatpush.msra.mxu0 0.0
        %935 = vmatpush.msra.mxu0 0.0
        %936 = vmatpush.msra.mxu0 0.0
        %937 = vmatpush.msra.mxu0 0.0
        %938 = vmatpush.msra.mxu0 0.0
        %939 = vmatpush.msra.mxu0 0.0
        %940 = vmatpush.msra.mxu0 0.0
        %941 = vmatpush.msra.mxu0 0.0
        %942 = vmatpush.msra.mxu0 0.0
        %943 = vmatpush.msra.mxu0 0.0
        %944 = vmatpush.msra.mxu0 0.0
        %945 = vmatpush.msra.mxu0 0.0
        %946 = vmatpush.msra.mxu0 0.0
        %947 = vmatpush.msra.mxu0 0.0
        %948 = vmatpush.msra.mxu0 0.0
        %949 = vmatpush.msra.mxu0 %v420
        %950 = vmatmul.f32.gmra.mxu0 %v932
        %v951 = vpop.f32.mrf.mxu0
        %v952 = vadd.f32 0.0, %v951
        %953 = vdwg.mxu0
        %v955 = vsel %vm651, %v763, 0
        %957 = vmatpush.msra.mxu0 0.0
        %958 = vmatpush.msra.mxu0 0.0
        %959 = vmatpush.msra.mxu0 0.0
        %960 = vmatpush.msra.mxu0 0.0
        %961 = vmatpush.msra.mxu0 0.0
        %962 = vmatpush.msra.mxu0 0.0
        %963 = vmatpush.msra.mxu0 0.0
        %964 = vmatpush.msra.mxu0 0.0
        %965 = vmatpush.msra.mxu0 0.0
        %966 = vmatpush.msra.mxu0 0.0
        %967 = vmatpush.msra.mxu0 0.0
        %968 = vmatpush.msra.mxu0 0.0
        %969 = vmatpush.msra.mxu0 0.0
        %970 = vmatpush.msra.mxu0 0.0
        %971 = vmatpush.msra.mxu0 0.0
        %972 = vmatpush.msra.mxu0 %v421
        %973 = vmatmul.f32.gmra.mxu0 %v955
        %v974 = vpop.f32.mrf.mxu0
        %v975 = vadd.f32 0.0, %v974
        %976 = vdwg.mxu0
        %v978 = vsel %vm651, %v765, 0
        %980 = vmatpush.msra.mxu0 0.0
        %981 = vmatpush.msra.mxu0 0.0
        %982 = vmatpush.msra.mxu0 0.0
        %983 = vmatpush.msra.mxu0 0.0
        %984 = vmatpush.msra.mxu0 0.0
        %985 = vmatpush.msra.mxu0 0.0
        %986 = vmatpush.msra.mxu0 0.0
        %987 = vmatpush.msra.mxu0 0.0
        %988 = vmatpush.msra.mxu0 0.0
        %989 = vmatpush.msra.mxu0 0.0
        %990 = vmatpush.msra.mxu0 0.0
        %991 = vmatpush.msra.mxu0 0.0
        %992 = vmatpush.msra.mxu0 0.0
        %993 = vmatpush.msra.mxu0 0.0
        %994 = vmatpush.msra.mxu0 0.0
        %995 = vmatpush.msra.mxu0 %v422
        %996 = vmatmul.f32.gmra.mxu0 %v978
        %v997 = vpop.f32.mrf.mxu0
        %v998 = vadd.f32 0.0, %v997
        %999 = vdwg.mxu0
        %v1001 = vsel %vm651, %v767, 0
        %1003 = vmatpush.msra.mxu0 0.0
        %1004 = vmatpush.msra.mxu0 0.0
        %1005 = vmatpush.msra.mxu0 0.0
        %1006 = vmatpush.msra.mxu0 0.0
        %1007 = vmatpush.msra.mxu0 0.0
        %1008 = vmatpush.msra.mxu0 0.0
        %1009 = vmatpush.msra.mxu0 0.0
        %1010 = vmatpush.msra.mxu0 0.0
        %1011 = vmatpush.msra.mxu0 0.0
        %1012 = vmatpush.msra.mxu0 0.0
        %1013 = vmatpush.msra.mxu0 0.0
        %1014 = vmatpush.msra.mxu0 0.0
        %1015 = vmatpush.msra.mxu0 0.0
        %1016 = vmatpush.msra.mxu0 0.0
        %1017 = vmatpush.msra.mxu0 0.0
        %1018 = vmatpush.msra.mxu0 %v423
        %1019 = vmatmul.f32.gmra.mxu0 %v1001
        %v1020 = vpop.f32.mrf.mxu0
        %v1021 = vadd.f32 0.0, %v1020
        %1022 = vdwg.mxu0
        %v1024 = vsel %vm651, %v769, 0
        %1026 = vmatpush.msra.mxu0 0.0
        %1027 = vmatpush.msra.mxu0 0.0
        %1028 = vmatpush.msra.mxu0 0.0
        %1029 = vmatpush.msra.mxu0 0.0
        %1030 = vmatpush.msra.mxu0 0.0
        %1031 = vmatpush.msra.mxu0 0.0
        %1032 = vmatpush.msra.mxu0 0.0
        %1033 = vmatpush.msra.mxu0 0.0
        %1034 = vmatpush.msra.mxu0 0.0
        %1035 = vmatpush.msra.mxu0 0.0
        %1036 = vmatpush.msra.mxu0 0.0
        %1037 = vmatpush.msra.mxu0 0.0
        %1038 = vmatpush.msra.mxu0 0.0
        %1039 = vmatpush.msra.mxu0 0.0
        %1040 = vmatpush.msra.mxu0 0.0
        %1041 = vmatpush.msra.mxu0 %v424
        %1042 = vmatmul.f32.gmra.mxu0 %v1024
        %v1043 = vpop.f32.mrf.mxu0
        %v1044 = vadd.f32 0.0, %v1043
        %1045 = vdwg.mxu0
        %v1047 = vsel %vm651, %v771, 0
        %1049 = vmatpush.msra.mxu0 0.0
        %1050 = vmatpush.msra.mxu0 0.0
        %1051 = vmatpush.msra.mxu0 0.0
        %1052 = vmatpush.msra.mxu0 0.0
        %1053 = vmatpush.msra.mxu0 0.0
        %1054 = vmatpush.msra.mxu0 0.0
        %1055 = vmatpush.msra.mxu0 0.0
        %1056 = vmatpush.msra.mxu0 0.0
        %1057 = vmatpush.msra.mxu0 0.0
        %1058 = vmatpush.msra.mxu0 0.0
        %1059 = vmatpush.msra.mxu0 0.0
        %1060 = vmatpush.msra.mxu0 0.0
        %1061 = vmatpush.msra.mxu0 0.0
        %1062 = vmatpush.msra.mxu0 0.0
        %1063 = vmatpush.msra.mxu0 0.0
        %1064 = vmatpush.msra.mxu0 %v425
        %1065 = vmatmul.f32.gmra.mxu0 %v1047
        %v1066 = vpop.f32.mrf.mxu0
        %v1067 = vadd.f32 0.0, %v1066
        %1068 = vdwg.mxu0
        %v1069 = vadd.f32 %v877, %v906
        %v1070 = vadd.f32 %v878, %v929
        %v1071 = vadd.f32 %v879, %v952
        %v1072 = vadd.f32 %v880, %v975
        %v1073 = vadd.f32 %v881, %v998
        %v1074 = vadd.f32 %v882, %v1021
        %v1075 = vadd.f32 %v883, %v1044
        %v1076 = vadd.f32 %v884, %v1067
        %1077 = vst.msk [vmem:[#allocation7] sm:$0xff] %vm434, %v1069
        %1078 = vst.msk [vmem:[#allocation7 + $0x8] sm:$0xff] %vm434, %v1070
        %1079 = vst.msk [vmem:[#allocation7 + $0x10] sm:$0xff] %vm434, %v1071
        %1080 = vst.msk [vmem:[#allocation7 + $0x18] sm:$0xff] %vm434, %v1072
        %1081 = vst.msk [vmem:[#allocation7 + $0x20] sm:$0xff] %vm434, %v1073
        %1082 = vst.msk [vmem:[#allocation7 + $0x28] sm:$0xff] %vm434, %v1074
        %1083 = vst.msk [vmem:[#allocation7 + $0x30] sm:$0xff] %vm434, %v1075
        %1084 = vst.msk [vmem:[#allocation7 + $0x38] sm:$0xff] %vm434, %v1076
        %1085 = vst.msk [vmem:[#allocation5] sm:$0xff] %vm820, %v676
        %1086 = vst.msk [vmem:[#allocation5 + $0x8] sm:$0xff] %vm820, %v677
        %1087 = vst.msk [vmem:[#allocation5 + $0x10] sm:$0xff] %vm820, %v678
        %1088 = vst.msk [vmem:[#allocation5 + $0x18] sm:$0xff] %vm820, %v679
        %1089 = vst.msk [vmem:[#allocation5 + $0x20] sm:$0xff] %vm820, %v680
        %1090 = vst.msk [vmem:[#allocation5 + $0x28] sm:$0xff] %vm820, %v681
        %1091 = vst.msk [vmem:[#allocation5 + $0x30] sm:$0xff] %vm820, %v682
        %1092 = vst.msk [vmem:[#allocation5 + $0x38] sm:$0xff] %vm820, %v683
        // Predicated region
        $region45: #{tpu_custom_call.1} parent=31 // pred_check
          %p1093 = pneg %p226
        $region46: #{tpu_custom_call.1} parent=31 // pred_check_branch
          %1095 = sbr.rel (%p1093) target = $region48
        $region47: #{tpu_custom_call.1} parent=31 // pred_region
          %v1096 = vld [vmem:[#allocation6] sm:$0xff]
          %v1097 = vld [vmem:[#allocation6 + $0x8] sm:$0xff]
          %v1098 = vld [vmem:[#allocation6 + $0x10] sm:$0xff]
          %v1099 = vld [vmem:[#allocation6 + $0x18] sm:$0xff]
          %v1100 = vld [vmem:[#allocation6 + $0x20] sm:$0xff]
          %v1101 = vld [vmem:[#allocation6 + $0x28] sm:$0xff]
          %v1102 = vld [vmem:[#allocation6 + $0x30] sm:$0xff]
          %v1103 = vld [vmem:[#allocation6 + $0x38] sm:$0xff]
          %v1104 = vrcp.pop %v1096
          %v1105 = vrcp.pop %v1097
          %v1106 = vrcp.pop %v1098
          %v1107 = vrcp.pop %v1099
          %v1108 = vrcp.pop %v1100
          %v1109 = vrcp.pop %v1101
          %v1110 = vrcp.pop %v1102
          %v1111 = vrcp.pop %v1103
          %v1112 = vld [vmem:[#allocation7] sm:$0xff]
          %v1113 = vld [vmem:[#allocation7 + $0x8] sm:$0xff]
          %v1114 = vld [vmem:[#allocation7 + $0x10] sm:$0xff]
          %v1115 = vld [vmem:[#allocation7 + $0x18] sm:$0xff]
          %v1116 = vld [vmem:[#allocation7 + $0x20] sm:$0xff]
          %v1117 = vld [vmem:[#allocation7 + $0x28] sm:$0xff]
          %v1118 = vld [vmem:[#allocation7 + $0x30] sm:$0xff]
          %v1119 = vld [vmem:[#allocation7 + $0x38] sm:$0xff]
          %1121 = vset.pattern.permute.xlu0 0
          %1122 = vperm.xlu0 %1121, %v1104
          %v1123 = vpop.permute.xlu0 %1122
          %1126 = vset.pattern.permute.xlu0 0
          %1127 = vperm.xlu0 %1126, %v1105
          %v1128 = vpop.permute.xlu0 %1127
          %1131 = vset.pattern.permute.xlu0 0
          %1132 = vperm.xlu0 %1131, %v1106
          %v1133 = vpop.permute.xlu0 %1132
          %1136 = vset.pattern.permute.xlu0 0
          %1137 = vperm.xlu0 %1136, %v1107
          %v1138 = vpop.permute.xlu0 %1137
          %1141 = vset.pattern.permute.xlu0 0
          %1142 = vperm.xlu0 %1141, %v1108
          %v1143 = vpop.permute.xlu0 %1142
          %1146 = vset.pattern.permute.xlu0 0
          %1147 = vperm.xlu0 %1146, %v1109
          %v1148 = vpop.permute.xlu0 %1147
          %1151 = vset.pattern.permute.xlu0 0
          %1152 = vperm.xlu0 %1151, %v1110
          %v1153 = vpop.permute.xlu0 %1152
          %1156 = vset.pattern.permute.xlu0 0
          %1157 = vperm.xlu0 %1156, %v1111
          %v1158 = vpop.permute.xlu0 %1157
          %v1160 = vmul.f32 %v1112, %v1123
          %v1161 = vmul.f32 %v1113, %v1128
          %v1162 = vmul.f32 %v1114, %v1133
          %v1163 = vmul.f32 %v1115, %v1138
          %v1164 = vmul.f32 %v1116, %v1143
          %v1165 = vmul.f32 %v1117, %v1148
          %v1166 = vmul.f32 %v1118, %v1153
          %v1167 = vmul.f32 %v1119, %v1158
          %1169 = vrot.lane.b32.xlu0 %v1161, 4
          %v1170 = vpop.permute.xlu0 %1169
          %1173 = vrot.lane.b32.xlu0 %v1162, 8
          %v1174 = vpop.permute.xlu0 %1173
          %1177 = vrot.lane.b32.xlu0 %v1163, 12
          %v1178 = vpop.permute.xlu0 %1177
          %1181 = vrot.lane.b32.xlu0 %v1164, 16
          %v1182 = vpop.permute.xlu0 %1181
          %1185 = vrot.lane.b32.xlu0 %v1165, 20
          %v1186 = vpop.permute.xlu0 %1185
          %1189 = vrot.lane.b32.xlu0 %v1166, 24
          %v1190 = vpop.permute.xlu0 %1189
          %1193 = vrot.lane.b32.xlu0 %v1167, 28
          %v1194 = vpop.permute.xlu0 %1193
          %v1196 = vsel %vm434, %v1160, %v1170
          %v1197 = vsel %vm651, %v1196, %v1174
          %vm1198 = vcmask 97280
          %v1199 = vsel %vm1198, %v1197, %v1178
          %vm1200 = vcmask 130048
          %v1201 = vsel %vm1200, %v1199, %v1182
          %vm1202 = vcmask 162816
          %v1203 = vsel %vm1202, %v1201, %v1186
          %vm1204 = vcmask 195584
          %v1205 = vsel %vm1204, %v1203, %v1190
          %vm1206 = vcmask 228352
          %v1207 = vsel %vm1206, %v1205, %v1194
          %vm1208 = vcmask 261120
          %1209 = vst.msk [vmem:[%s225] sm:$0xff] %vm1208, %v1207
        $region48: #{tpu_custom_call.1} parent=31 // pred_fallthru
          _
        %s1210 = sand.u32 %s118, 1
        %s1211 = scalar_lea.sflag [#allocation10], %s1210
        %s1212 = sand.u32 %s118, 1
        %s1213 = smul.addr %s1212, 8
        %s1214 = scalar_lea.vmem [#allocation13], %s1213
        // Predicated region
        $region49: #{tpu_custom_call.1} parent=31 // pred_check
          %p1215 = pneg %p128
        $region50: #{tpu_custom_call.1} parent=31 // pred_check_branch
          %1217 = sbr.rel (%p1215) target = $region52
        $region51: #{tpu_custom_call.1} parent=31 // pred_region
          %1219 = vsyncadd %s1211, 0
          %s1220 = sadd.s32 %s27, %s26
          %s1221 = smul.addr %s1220, 8
          %s1222 = scalar_lea.hbm %s3, %s1221
          %s1224 = sshll.u32 %s1214, 4
          %s1225 = int_to_ptr.vmem [resolvable:$true] %s1224
          %s1226 = sshll.u32 %s1222, 4
          %s1227 = int_to_ptr.hbm [resolvable:$true] %s1226
          %1229 = dma.vmem_to_hbm [thread:$0]  %s1225, 128, %s1227, %s1211
        $region52: #{tpu_custom_call.1} parent=31 // pred_fallthru
          _
      $region32: #{tpu_custom_call.1} parent=5 // pred_fallthru
        _
      %p1230 = scmp.le.s32.totalorder 2, %s16
      // Predicated region
      $region53: #{tpu_custom_call.1} parent=5 // pred_check
        %p1231 = pneg %p1230
      $region54: #{tpu_custom_call.1} parent=5 // pred_check_branch
        %1233 = sbr.rel (%p1231) target = $region56
      $region55: #{tpu_custom_call.1} parent=5 // pred_region
        %s1234 = ssub.s32 %s16, 2
        // Predicated region
        $region57: #{tpu_custom_call.1} parent=55 // pred_check
          %p1235 = pneg %p134
        $region58: #{tpu_custom_call.1} parent=55 // pred_check_branch
          %1237 = sbr.rel (%p1235) target = $region60
        $region59: #{tpu_custom_call.1} parent=55 // pred_region
          %s1238 = sand.u32 %s119, 1
          %s1239 = scalar_lea.sflag [#allocation10], %s1238
          %s1240 = sand.u32 %s119, 1
          %s1241 = smul.addr %s1240, 8
          %s1242 = scalar_lea.vmem [#allocation13], %s1241
          %1244 = dma.done %s1239, 128
        $region60: #{tpu_custom_call.1} parent=55 // pred_fallthru
          _
      $region56: #{tpu_custom_call.1} parent=5 // pred_fallthru
        _
    $region6: #{tpu_custom_call.1} parent=1 // loop_footer
      %s20 = sadd.s32 1, %s16
    $region7: #{tpu_custom_call.1} parent=1 // loop_footer_branch
      %15 = sbr.rel target = $region3
    $region8: #{tpu_custom_call.1} parent=1 // loop_exit
      _
    %1245 = vsyncpa [#allocation9], 1
    %s1246 = scalar_lea.sflag [#allocation9], 1
    %1247 = vsyncpa %s1246, 1
    %1248 = vsyncpa [#allocation12], 1
    %1249 = vsyncpa [#allocation10], 1
    %s1250 = scalar_lea.sflag [#allocation10], 1
    %1251 = vsyncpa %s1250, 1

</llo_original>
